<compile_context>
chip_gen: v6e
topology: v6e:2x2x1
jax: 0.10.0
libtpu: 0.0.40
codegen_flags: <defaults>
</compile_context>

<pallas_src>
import functools
import inspect

import jax
import jax.numpy as jnp
from jax import lax
from jax.experimental import pallas as pl
from jax.experimental.pallas import tpu as pltpu

LANE = 128          # TPU lane width; all feature dims padded to a multiple of this
MAX_TILE_M = 512    # max batch rows per grid step (sweep-validated sweet spot)
H1, H2 = 256, 128   # hidden sizes from the PyTorch module
H3_PAD = 128        # layer-3 hidden (64) padded up to a full lane width
NEG_INF = -1e30     # "minus infinity" for masking padded logit lanes before argmax

_HAS_PIPELINE_MODE = (
    "pipeline_mode" in inspect.signature(pl.BlockSpec).parameters
    and hasattr(pl, "Buffered"))


def _round_up(x, m):
    return (x + m - 1) // m * m


def _choose_tile_m(b_pad, max_tile=MAX_TILE_M):
    """Pick a batch tile: as large as possible (<= max_tile), dividing b_pad,
    and keeping >= 2 grid steps when the batch allows (v7x megacore)."""
    n_blocks = b_pad // LANE                      # b_pad is a multiple of LANE
    tile_blocks = max(1, min(max_tile // LANE, n_blocks))
    while n_blocks % tile_blocks:
        tile_blocks -= 1
    if n_blocks // tile_blocks < 2 and n_blocks >= 2:
        tile_blocks = n_blocks // 2
        while n_blocks % tile_blocks:
            tile_blocks -= 1
    return tile_blocks * LANE


def mlp_kernel(x_ref,
               w1_ref, b1_ref,
               w2_ref, b2_ref,
               w3_ref, b3_ref,
               w4_ref, b4_ref,
               logits_ref, preds_ref, *, n_valid):
    # layer1 + ReLU   (bf16 operands -> f32 accumulate; bias/ReLU in f32)
    x = x_ref[...].astype(jnp.bfloat16)
    h = jnp.dot(x, w1_ref[...], preferred_element_type=jnp.float32)
    h = jnp.maximum(h + b1_ref[...], 0.0)
    # layer2 + ReLU
    h = jnp.dot(h.astype(jnp.bfloat16), w2_ref[...],
                preferred_element_type=jnp.float32)
    h = jnp.maximum(h + b2_ref[...], 0.0)
    # layer3 + ReLU (hidden padded 64 -> 128; padded lanes stay exactly 0)
    h = jnp.dot(h.astype(jnp.bfloat16), w3_ref[...],
                preferred_element_type=jnp.float32)
    h = jnp.maximum(h + b3_ref[...], 0.0)
    # layer4 (logits, padded 10 -> 128; padded lanes stay exactly 0)
    h = jnp.dot(h.astype(jnp.bfloat16), w4_ref[...],
                preferred_element_type=jnp.float32)
    logits = h + b4_ref[...]                              # f32 (tile_m, d_out)
    logits_ref[...] = logits.astype(logits_ref.dtype)     # bf16 lane-dense store

    # Fused predict(): mask padded lanes to -inf, first-occurrence argmax across
    # lanes (XLU reductions on an otherwise idle slot), emit int32 predictions.
    tile_m, d_out = logits.shape
    col = lax.broadcasted_iota(jnp.int32, (tile_m, d_out), 1)
    masked = jnp.where(col < n_valid, logits, NEG_INF)
    row_max = jnp.max(masked, axis=-1, keepdims=True)
    idx = jnp.where(masked >= row_max, col, d_out)        # sentinel for non-max
    preds_ref[...] = jnp.min(idx, axis=-1, keepdims=True).astype(jnp.int32)


def init_params(key, input_size, output_size):
    """f32 params matching nn.Linear, stored transposed: w (in,out), b (1,out)."""
    dims = [(input_size, 256), (256, 128), (128, 64), (64, output_size)]
    params = {}
    for idx, (fin, fout) in enumerate(dims, start=1):
        key, kw, kb = jax.random.split(key, 3)
        bound = 1.0 / jnp.sqrt(fin)  # PyTorch default uniform bound
        params[f"w{idx}"] = jax.random.uniform(
            kw, (fin, fout), jnp.float32, minval=-bound, maxval=bound)
        params[f"b{idx}"] = jax.random.uniform(
            kb, (1, fout), jnp.float32, minval=-bound, maxval=bound)
    return params


def pack_params(params, input_size, output_size):
    """Pad feature dims to lane multiples and cast weights to bf16 ONCE
    (weight-stationary: never re-materialized per forward call)."""
    d_in = _round_up(input_size, LANE)
    d_out = _round_up(output_size, LANE)

    def pad_w(w, rows, cols):
        out = jnp.zeros((rows, cols), jnp.float32)
        out = out.at[:w.shape[0], :w.shape[1]].set(w)
        return out.astype(jnp.bfloat16)

    def pad_b(b, cols):
        out = jnp.zeros((1, cols), jnp.float32)
        return out.at[:, :b.shape[1]].set(b)

    packed = {
        "w1": pad_w(params["w1"], d_in, H1),      "b1": pad_b(params["b1"], H1),
        "w2": pad_w(params["w2"], H1, H2),        "b2": pad_b(params["b2"], H2),
        "w3": pad_w(params["w3"], H2, H3_PAD),    "b3": pad_b(params["b3"], H3_PAD),
        "w4": pad_w(params["w4"], H3_PAD, d_out), "b4": pad_b(params["b4"], d_out),
    }
    return packed, d_in, d_out


def mlp_forward(x, packed, output_size):
    """x: (B, input_size) f32/bf16.
    Returns (logits (B, output_size) bf16, preds (B,) int32)."""
    B, f_in = x.shape
    d_in = packed["w1"].shape[0]
    d_out = packed["w4"].shape[1]
    b_pad = _round_up(max(B, LANE), LANE)
    tile_m = _choose_tile_m(b_pad)
    grid_m = b_pad // tile_m

    # Skip the extra HBM pad/copy when the activations already fit the tiling
    # (common case: B % tile_m == 0 and 128-wide features).
    if B == b_pad and f_in == d_in:
        xp = x
    else:
        xp = jnp.zeros((b_pad, d_in), x.dtype).at[:B, :f_in].set(x)

    const = lambda i: (0, 0)           # weights/biases resident across the grid
    if _HAS_PIPELINE_MODE:
        def w_spec(shape):
            return pl.BlockSpec(shape, const, pipeline_mode=pl.Buffered(1))
    else:
        def w_spec(shape):
            return pl.BlockSpec(shape, const)

    flops = 2 * b_pad * (d_in * H1 + H1 * H2 + H2 * H3_PAD + H3_PAD * d_out)
    bytes_accessed = (
        xp.size * xp.dtype.itemsize              # activations in
        + b_pad * d_out * 2 + b_pad * 4          # bf16 logits + int32 preds out
        + sum(int(v.size) * v.dtype.itemsize for v in packed.values()))

    kernel = functools.partial(mlp_kernel, n_valid=output_size)

    logits_pad, preds_pad = pl.pallas_call(
        kernel,
        out_shape=(jax.ShapeDtypeStruct((b_pad, d_out), jnp.bfloat16),
                   jax.ShapeDtypeStruct((b_pad, 1), jnp.int32)),
        grid=(grid_m,),
        in_specs=[
            pl.BlockSpec((tile_m, d_in), lambda i: (i, 0)),   # activations
            w_spec((d_in, H1)),      w_spec((1, H1)),
            w_spec((H1, H2)),        w_spec((1, H2)),
            w_spec((H2, H3_PAD)),    w_spec((1, H3_PAD)),
            w_spec((H3_PAD, d_out)), w_spec((1, d_out)),
        ],
        out_specs=(pl.BlockSpec((tile_m, d_out), lambda i: (i, 0)),
                   pl.BlockSpec((tile_m, 1), lambda i: (i, 0))),
        compiler_params=pltpu.CompilerParams(
            dimension_semantics=("parallel",)),
        cost_estimate=pl.CostEstimate(
            flops=flops, transcendentals=0, bytes_accessed=bytes_accessed),
    )(xp,
      packed["w1"], packed["b1"],
      packed["w2"], packed["b2"],
      packed["w3"], packed["b3"],
      packed["w4"], packed["b4"])

    # Slice away batch padding and the zero-padded logit lanes.
    return logits_pad[:B, :output_size], preds_pad[:B, 0]


def reference_forward(x, params):
    """Pure-JAX reference with the same bf16-operand / f32-accumulate numerics."""
    def lin(h, w, b):
        return jnp.dot(h.astype(jnp.bfloat16), w.astype(jnp.bfloat16),
                       preferred_element_type=jnp.float32) + b
    h = jnp.maximum(lin(x, params["w1"], params["b1"]), 0.0)
    h = jnp.maximum(lin(h, params["w2"], params["b2"]), 0.0)
    h = jnp.maximum(lin(h, params["w3"], params["b3"]), 0.0)
    return lin(h, params["w4"], params["b4"])


if __name__ == "__main__":
    key = jax.random.PRNGKey(0)
    key, kx, kp = jax.random.split(key, 3)

    input_size, output_size, batch = 128, 10, 8
    x = jax.random.normal(kx, (batch, input_size), jnp.float32)
    params = init_params(kp, input_size, output_size)

    # One-time weight packing (pad + bf16 cast) — reused across forward calls.
    packed, _, _ = pack_params(params, input_size, output_size)

    logits, preds = mlp_forward(x, packed, output_size)
    jax.block_until_ready((logits, preds))

    ref = reference_forward(x, params)
    assert logits.shape == (batch, output_size)
    assert jnp.allclose(logits.astype(jnp.float32), ref, atol=5e-2, rtol=5e-2), \
        "logits mismatch vs reference"

    # fused equivalent of .predict()
    assert preds.shape == (batch,)
    assert preds.dtype == jnp.int32
    assert jnp.array_equal(preds, jnp.argmax(ref, axis=1)), \
        "preds mismatch vs reference argmax"

    # TODO(synk): train_model / estimate_loss (cross-entropy + AdamW loop) are
    # host-side training utilities, out of scope for the forward-pass kernel.

    print("KERNEL_OK")
</pallas_src>

<mosaic_0001>
module attributes {stable_mosaic.version = 11 : i64} {
  func.func @mlp_kernel(%arg0: i32, %arg1: memref<128x128xf32, #tpu.memory_space<vmem>>, %arg2: memref<128x256xbf16, #tpu.memory_space<vmem>>, %arg3: memref<1x256xf32, #tpu.memory_space<vmem>>, %arg4: memref<256x128xbf16, #tpu.memory_space<vmem>>, %arg5: memref<1x128xf32, #tpu.memory_space<vmem>>, %arg6: memref<128x128xbf16, #tpu.memory_space<vmem>>, %arg7: memref<1x128xf32, #tpu.memory_space<vmem>>, %arg8: memref<128x128xbf16, #tpu.memory_space<vmem>>, %arg9: memref<1x128xf32, #tpu.memory_space<vmem>>, %arg10: memref<128x128xbf16, #tpu.memory_space<vmem>>, %arg11: memref<128x1xi32, #tpu.memory_space<vmem>>) attributes {dimension_semantics = [#tpu.dimension_semantics<parallel>], iteration_bounds = array<i64: 1>, scalar_prefetch = 0 : i64, scratch_operands = 0 : i64, tpu.core_type = #tpu.core_type<tc>, window_params = [{transform_indices = @transform_0, window_bounds = array<i64: 128, 128>}, {pipeline_mode = #tpu.pipeline_mode<synchronous>, transform_indices = @transform_1, window_bounds = array<i64: 128, 256>}, {pipeline_mode = #tpu.pipeline_mode<synchronous>, transform_indices = @transform_2, window_bounds = array<i64: 1, 256>}, {pipeline_mode = #tpu.pipeline_mode<synchronous>, transform_indices = @transform_3, window_bounds = array<i64: 256, 128>}, {pipeline_mode = #tpu.pipeline_mode<synchronous>, transform_indices = @transform_4, window_bounds = array<i64: 1, 128>}, {pipeline_mode = #tpu.pipeline_mode<synchronous>, transform_indices = @transform_5, window_bounds = array<i64: 128, 128>}, {pipeline_mode = #tpu.pipeline_mode<synchronous>, transform_indices = @transform_6, window_bounds = array<i64: 1, 128>}, {pipeline_mode = #tpu.pipeline_mode<synchronous>, transform_indices = @transform_7, window_bounds = array<i64: 128, 128>}, {pipeline_mode = #tpu.pipeline_mode<synchronous>, transform_indices = @transform_8, window_bounds = array<i64: 1, 128>}, {transform_indices = @transform_9, window_bounds = array<i64: 128, 128>}, {transform_indices = @transform_10, window_bounds = array<i64: 128, 1>}]} {
    %c0 = arith.constant 0 : index
    %c0_0 = arith.constant 0 : index
    %0 = vector.load %arg1[%c0, %c0_0] : memref<128x128xf32, #tpu.memory_space<vmem>>, vector<128x128xf32>
    %1 = arith.truncf %0 : vector<128x128xf32> to vector<128x128xbf16>
    %c0_1 = arith.constant 0 : index
    %c0_2 = arith.constant 0 : index
    %2 = vector.load %arg2[%c0_1, %c0_2] : memref<128x256xbf16, #tpu.memory_space<vmem>>, vector<128x256xbf16>
    %cst = arith.constant dense<0.000000e+00> : vector<128x256xf32>
    %3 = tpu.matmul %1, %2, %cst {dimension_numbers = #tpu.dot_dimension_numbers<[1], [0], [0], [1], [0, 0, 1, 1], [], []>} : vector<128x128xbf16>, vector<128x256xbf16>, vector<128x256xf32> -> vector<128x256xf32>
    %c0_3 = arith.constant 0 : index
    %c0_4 = arith.constant 0 : index
    %4 = vector.load %arg3[%c0_3, %c0_4] : memref<1x256xf32, #tpu.memory_space<vmem>>, vector<1x256xf32>
    %5 = vector.broadcast %4 : vector<1x256xf32> to vector<128x256xf32>
    %6 = arith.addf %3, %5 : vector<128x256xf32>
    %cst_5 = arith.constant 0.000000e+00 : f32
    %7 = vector.broadcast %cst_5 : f32 to vector<128x256xf32>
    %8 = arith.maximumf %6, %7 : vector<128x256xf32>
    %9 = arith.truncf %8 : vector<128x256xf32> to vector<128x256xbf16>
    %c0_6 = arith.constant 0 : index
    %c0_7 = arith.constant 0 : index
    %10 = vector.load %arg4[%c0_6, %c0_7] : memref<256x128xbf16, #tpu.memory_space<vmem>>, vector<256x128xbf16>
    %cst_8 = arith.constant dense<0.000000e+00> : vector<128x128xf32>
    %11 = tpu.matmul %9, %10, %cst_8 {dimension_numbers = #tpu.dot_dimension_numbers<[1], [0], [0], [1], [0, 0, 1, 1], [], []>} : vector<128x256xbf16>, vector<256x128xbf16>, vector<128x128xf32> -> vector<128x128xf32>
    %c0_9 = arith.constant 0 : index
    %c0_10 = arith.constant 0 : index
    %12 = vector.load %arg5[%c0_9, %c0_10] : memref<1x128xf32, #tpu.memory_space<vmem>>, vector<1x128xf32>
    %13 = vector.broadcast %12 : vector<1x128xf32> to vector<128x128xf32>
    %14 = arith.addf %11, %13 : vector<128x128xf32>
    %cst_11 = arith.constant 0.000000e+00 : f32
    %15 = vector.broadcast %cst_11 : f32 to vector<128x128xf32>
    %16 = arith.maximumf %14, %15 : vector<128x128xf32>
    %17 = arith.truncf %16 : vector<128x128xf32> to vector<128x128xbf16>
    %c0_12 = arith.constant 0 : index
    %c0_13 = arith.constant 0 : index
    %18 = vector.load %arg6[%c0_12, %c0_13] : memref<128x128xbf16, #tpu.memory_space<vmem>>, vector<128x128xbf16>
    %cst_14 = arith.constant dense<0.000000e+00> : vector<128x128xf32>
    %19 = tpu.matmul %17, %18, %cst_14 {dimension_numbers = #tpu.dot_dimension_numbers<[1], [0], [0], [1], [0, 0, 1, 1], [], []>} : vector<128x128xbf16>, vector<128x128xbf16>, vector<128x128xf32> -> vector<128x128xf32>
    %c0_15 = arith.constant 0 : index
    %c0_16 = arith.constant 0 : index
    %20 = vector.load %arg7[%c0_15, %c0_16] : memref<1x128xf32, #tpu.memory_space<vmem>>, vector<1x128xf32>
    %21 = vector.broadcast %20 : vector<1x128xf32> to vector<128x128xf32>
    %22 = arith.addf %19, %21 : vector<128x128xf32>
    %cst_17 = arith.constant 0.000000e+00 : f32
    %23 = vector.broadcast %cst_17 : f32 to vector<128x128xf32>
    %24 = arith.maximumf %22, %23 : vector<128x128xf32>
    %25 = arith.truncf %24 : vector<128x128xf32> to vector<128x128xbf16>
    %c0_18 = arith.constant 0 : index
    %c0_19 = arith.constant 0 : index
    %26 = vector.load %arg8[%c0_18, %c0_19] : memref<128x128xbf16, #tpu.memory_space<vmem>>, vector<128x128xbf16>
    %cst_20 = arith.constant dense<0.000000e+00> : vector<128x128xf32>
    %27 = tpu.matmul %25, %26, %cst_20 {dimension_numbers = #tpu.dot_dimension_numbers<[1], [0], [0], [1], [0, 0, 1, 1], [], []>} : vector<128x128xbf16>, vector<128x128xbf16>, vector<128x128xf32> -> vector<128x128xf32>
    %c0_21 = arith.constant 0 : index
    %c0_22 = arith.constant 0 : index
    %28 = vector.load %arg9[%c0_21, %c0_22] : memref<1x128xf32, #tpu.memory_space<vmem>>, vector<1x128xf32>
    %29 = vector.broadcast %28 : vector<1x128xf32> to vector<128x128xf32>
    %30 = arith.addf %27, %29 : vector<128x128xf32>
    %31 = arith.truncf %30 : vector<128x128xf32> to vector<128x128xbf16>
    %c0_23 = arith.constant 0 : index
    %c0_24 = arith.constant 0 : index
    %32 = vector.load %arg10[%c0_23, %c0_24] : memref<128x128xbf16, #tpu.memory_space<vmem>>, vector<128x128xbf16>
    tpu.vector_store %arg10[%c0_23, %c0_24], %31 {strides = array<i32>} : memref<128x128xbf16, #tpu.memory_space<vmem>>, vector<128x128xbf16>,
    %33 = tpu.iota {dimensions = array<i32: 1>} : vector<128x128xi32>
    %c10_i32 = arith.constant 10 : i32
    %34 = vector.broadcast %c10_i32 : i32 to vector<128x128xi32>
    %35 = arith.cmpi slt, %33, %34 : vector<128x128xi32>
    %cst_25 = arith.constant -1.000000e+30 : f32
    %36 = vector.broadcast %cst_25 : f32 to vector<128x128xf32>
    %37 = arith.select %35, %30, %36 : vector<128x128xi1>, vector<128x128xf32>
    %cst_26 = arith.constant dense<0xFF800000> : vector<128xf32>
    %38 = vector.multi_reduction <maximumf>, %37, %cst_26 [1] : vector<128x128xf32> to vector<128xf32>
    %39 = vector.shape_cast %38 : vector<128xf32> to vector<128x1xf32>
    %40 = vector.broadcast %39 : vector<128x1xf32> to vector<128x128xf32>
    %41 = arith.cmpf oge, %37, %40 : vector<128x128xf32>
    %c128_i32 = arith.constant 128 : i32
    %42 = vector.broadcast %c128_i32 : i32 to vector<128x128xi32>
    %43 = arith.select %41, %33, %42 : vector<128x128xi1>, vector<128x128xi32>
    %cst_27 = arith.constant dense<2147483647> : vector<128xi32>
    %44 = vector.multi_reduction <minsi>, %43, %cst_27 [1] : vector<128x128xi32> to vector<128xi32>
    %45 = vector.shape_cast %44 : vector<128xi32> to vector<128x1xi32>
    %c0_28 = arith.constant 0 : index
    %c0_29 = arith.constant 0 : index
    %46 = vector.load %arg11[%c0_28, %c0_29] : memref<128x1xi32, #tpu.memory_space<vmem>>, vector<128x1xi32>
    tpu.vector_store %arg11[%c0_28, %c0_29], %45 {strides = array<i32>} : memref<128x1xi32, #tpu.memory_space<vmem>>, vector<128x1xi32>,
    return
  }
  func.func @transform_0(%arg0: i32) -> (i32, i32) {
    %c0_i32 = arith.constant 0 : i32
    %c0_i32_0 = arith.constant 0 : i32
    return %arg0, %c0_i32 : i32, i32
  }
  func.func @transform_1(%arg0: i32) -> (i32, i32) {
    %c0_i32 = arith.constant 0 : i32
    %c0_i32_0 = arith.constant 0 : i32
    %c0_i32_1 = arith.constant 0 : i32
    return %c0_i32, %c0_i32_0 : i32, i32
  }
  func.func @transform_2(%arg0: i32) -> (i32, i32) {
    %c0_i32 = arith.constant 0 : i32
    %c0_i32_0 = arith.constant 0 : i32
    %c0_i32_1 = arith.constant 0 : i32
    return %c0_i32, %c0_i32_0 : i32, i32
  }
  func.func @transform_3(%arg0: i32) -> (i32, i32) {
    %c0_i32 = arith.constant 0 : i32
    %c0_i32_0 = arith.constant 0 : i32
    %c0_i32_1 = arith.constant 0 : i32
    return %c0_i32, %c0_i32_0 : i32, i32
  }
  func.func @transform_4(%arg0: i32) -> (i32, i32) {
    %c0_i32 = arith.constant 0 : i32
    %c0_i32_0 = arith.constant 0 : i32
    %c0_i32_1 = arith.constant 0 : i32
    return %c0_i32, %c0_i32_0 : i32, i32
  }
  func.func @transform_5(%arg0: i32) -> (i32, i32) {
    %c0_i32 = arith.constant 0 : i32
    %c0_i32_0 = arith.constant 0 : i32
    %c0_i32_1 = arith.constant 0 : i32
    return %c0_i32, %c0_i32_0 : i32, i32
  }
  func.func @transform_6(%arg0: i32) -> (i32, i32) {
    %c0_i32 = arith.constant 0 : i32
    %c0_i32_0 = arith.constant 0 : i32
    %c0_i32_1 = arith.constant 0 : i32
    return %c0_i32, %c0_i32_0 : i32, i32
  }
  func.func @transform_7(%arg0: i32) -> (i32, i32) {
    %c0_i32 = arith.constant 0 : i32
    %c0_i32_0 = arith.constant 0 : i32
    %c0_i32_1 = arith.constant 0 : i32
    return %c0_i32, %c0_i32_0 : i32, i32
  }
  func.func @transform_8(%arg0: i32) -> (i32, i32) {
    %c0_i32 = arith.constant 0 : i32
    %c0_i32_0 = arith.constant 0 : i32
    %c0_i32_1 = arith.constant 0 : i32
    return %c0_i32, %c0_i32_0 : i32, i32
  }
  func.func @transform_9(%arg0: i32) -> (i32, i32) {
    %c0_i32 = arith.constant 0 : i32
    %c0_i32_0 = arith.constant 0 : i32
    return %arg0, %c0_i32 : i32, i32
  }
  func.func @transform_10(%arg0: i32) -> (i32, i32) {
    %c0_i32 = arith.constant 0 : i32
    %c0_i32_0 = arith.constant 0 : i32
    return %arg0, %c0_i32 : i32, i32
  }
}

</mosaic_0001>

<llo_original>
// kernel: tpu_custom_call.1
$region0: #{tpu_custom_call.1}
  #allocation0 [shape = 'u32[]', space=smem, size = 0x4, offset = 0x4, fixed_abs, tag = 'smem constant byte address 0x4 - core index']
  #allocation1 [shape = 'u32[144,128]{1,0:T(1,128)}', space=vmem, size = 0x12000, scoped, tag = 'internal scratch']
  %s0 = inlined_call_operand.hbm [shape: f32[128,128], index: 0, kind: input, shape index: {}]
  %s1 = inlined_call_operand.hbm [shape: bf16[128,256], index: 1, kind: input, shape index: {}]
  %s2 = inlined_call_operand.vmem [shape: f32[1,256], index: 2, kind: input, shape index: {}]
  %s3 = inlined_call_operand.hbm [shape: bf16[256,128], index: 3, kind: input, shape index: {}]
  %s4 = inlined_call_operand.vmem [shape: f32[1,128], index: 4, kind: input, shape index: {}]
  %s5 = inlined_call_operand.hbm [shape: bf16[128,128], index: 5, kind: input, shape index: {}]
  %s6 = inlined_call_operand.vmem [shape: f32[1,128], index: 6, kind: input, shape index: {}]
  %s7 = inlined_call_operand.hbm [shape: bf16[128,128], index: 7, kind: input, shape index: {}]
  %s8 = inlined_call_operand.vmem [shape: f32[1,128], index: 8, kind: input, shape index: {}]
  %s9 = inlined_call_operand.hbm [shape: bf16[128,128], index: 9, kind: output, shape index: {0}]
  %s10 = inlined_call_operand.vmem [shape: s32[128,1], index: 10, kind: output, shape index: {1}]
  %11 = xla_tuple %s9, %s10
  %s12 = sld [smem:[#allocation0]]
  $region74: #{tpu_custom_call.1} parent=0
    _
  %s14 = ssub.s32 1, %s12
  %s15 = scalar_select 0, %s14, %s12
  $region1: #{tpu_custom_call.1} parent=0
    #allocation2 [shape = 'u8[65536]{0}', space=vmem, size = 0x10000, scoped, tag = 'input window, operand 0, single buffered']
    #allocation3 [shape = 's32[1]{0}', space=sflag, size = 0x4, scoped, tag = 'scoped memory for tpu_custom_call.1']
    #allocation4 [shape = 's32[1]{0}', space=sflag, size = 0x4, scoped, tag = 'scoped memory for tpu_custom_call.1']
    #allocation5 [shape = 'u8[65536]{0}', space=vmem, size = 0x10000, scoped, tag = 'input window, operand 1, single buffered']
    #allocation6 [shape = 's32[1]{0}', space=sflag, size = 0x4, scoped, tag = 'scoped memory for tpu_custom_call.1']
    #allocation7 [shape = 'u8[65536]{0}', space=vmem, size = 0x10000, scoped, tag = 'input window, operand 3, single buffered']
    #allocation8 [shape = 'u8[32768]{0}', space=vmem, size = 0x8000, scoped, tag = 'input window, operand 5, single buffered']
    #allocation9 [shape = 's32[1]{0}', space=sflag, size = 0x4, scoped, tag = 'scoped memory for tpu_custom_call.1']
    #allocation10 [shape = 'u8[32768]{0}', space=vmem, size = 0x8000, scoped, tag = 'input window, operand 7, single buffered']
    #allocation11 [shape = 'u8[32768]{0}', space=vmem, size = 0x8000, scoped, tag = 'output window, operand 0, single buffered']
    %16 = vsyncpa [#allocation3], 0
    %17 = vsyncpa [#allocation6], 0
    %18 = vsyncpa [#allocation9], 0
    %19 = vsyncpa [#allocation4], 0
    // Predicated region
    $region2: #{tpu_custom_call.1} parent=1 // pred_check
      _
    $region3: #{tpu_custom_call.1} parent=1 // pred_check_branch
      %21 = sbr.rel (0) target = $region5
    $region4: #{tpu_custom_call.1} parent=1 // pred_region
      %s23 = ssub.s32 2048, 2048
      %24 = vsyncadd [#allocation3], %s23
      %s25 = sshll.u32 [#allocation2], 4
      %s26 = int_to_ptr.vmem [resolvable:$true] %s25
      %31 = dma.hbm_to_vmem [thread:$0]  %s0, 2048, %s26, [#allocation3], 128, 128, 8
    $region5: #{tpu_custom_call.1} parent=1 // pred_fallthru
      _
    // Predicated region
    $region6: #{tpu_custom_call.1} parent=1 // pred_check
      _
    $region7: #{tpu_custom_call.1} parent=1 // pred_check_branch
      %33 = sbr.rel (0) target = $region9
    $region8: #{tpu_custom_call.1} parent=1 // pred_region
      %s35 = ssub.s32 2048, 2048
      %36 = vsyncadd [#allocation6], %s35
      %s37 = sshll.u32 [#allocation5], 4
      %s38 = int_to_ptr.vmem [resolvable:$true] %s37
      %43 = dma.hbm_to_vmem [thread:$0]  %s1, 2048, %s38, [#allocation6], 128, 128, 8
    $region9: #{tpu_custom_call.1} parent=1 // pred_fallthru
      _
    // Predicated region
    $region10: #{tpu_custom_call.1} parent=1 // pred_check
      _
    $region11: #{tpu_custom_call.1} parent=1 // pred_check_branch
      %45 = sbr.rel (0) target = $region13
    $region12: #{tpu_custom_call.1} parent=1 // pred_region
      _
    $region13: #{tpu_custom_call.1} parent=1 // pred_fallthru
      _
    // Predicated region
    $region14: #{tpu_custom_call.1} parent=1 // pred_check
      _
    $region15: #{tpu_custom_call.1} parent=1 // pred_check_branch
      %47 = sbr.rel (0) target = $region17
    $region16: #{tpu_custom_call.1} parent=1 // pred_region
      %s49 = ssub.s32 2048, 2048
      %50 = vsyncadd [#allocation6], %s49
      %s51 = sshll.u32 [#allocation7], 4
      %s52 = int_to_ptr.vmem [resolvable:$true] %s51
      %57 = dma.hbm_to_vmem [thread:$0]  %s3, 2048, %s52, [#allocation6], 64, 64, 4
    $region17: #{tpu_custom_call.1} parent=1 // pred_fallthru
      _
    // Predicated region
    $region18: #{tpu_custom_call.1} parent=1 // pred_check
      _
    $region19: #{tpu_custom_call.1} parent=1 // pred_check_branch
      %59 = sbr.rel (0) target = $region21
    $region20: #{tpu_custom_call.1} parent=1 // pred_region
      _
    $region21: #{tpu_custom_call.1} parent=1 // pred_fallthru
      _
    // Predicated region
    $region22: #{tpu_custom_call.1} parent=1 // pred_check
      _
    $region23: #{tpu_custom_call.1} parent=1 // pred_check_branch
      %61 = sbr.rel (0) target = $region25
    $region24: #{tpu_custom_call.1} parent=1 // pred_region
      %s63 = ssub.s32 1024, 1024
      %64 = vsyncadd [#allocation9], %s63
      %s65 = sshll.u32 [#allocation8], 4
      %s66 = int_to_ptr.vmem [resolvable:$true] %s65
      %71 = dma.hbm_to_vmem [thread:$0]  %s5, 1024, %s66, [#allocation9], 64, 64, 4
    $region25: #{tpu_custom_call.1} parent=1 // pred_fallthru
      _
    // Predicated region
    $region26: #{tpu_custom_call.1} parent=1 // pred_check
      _
    $region27: #{tpu_custom_call.1} parent=1 // pred_check_branch
      %73 = sbr.rel (0) target = $region29
    $region28: #{tpu_custom_call.1} parent=1 // pred_region
      _
    $region29: #{tpu_custom_call.1} parent=1 // pred_fallthru
      _
    // Predicated region
    $region30: #{tpu_custom_call.1} parent=1 // pred_check
      _
    $region31: #{tpu_custom_call.1} parent=1 // pred_check_branch
      %75 = sbr.rel (0) target = $region33
    $region32: #{tpu_custom_call.1} parent=1 // pred_region
      %s77 = ssub.s32 1024, 1024
      %78 = vsyncadd [#allocation9], %s77
      %s79 = sshll.u32 [#allocation10], 4
      %s80 = int_to_ptr.vmem [resolvable:$true] %s79
      %85 = dma.hbm_to_vmem [thread:$0]  %s7, 1024, %s80, [#allocation9], 64, 64, 4
    $region33: #{tpu_custom_call.1} parent=1 // pred_fallthru
      _
    // Predicated region
    $region34: #{tpu_custom_call.1} parent=1 // pred_check
      _
    $region35: #{tpu_custom_call.1} parent=1 // pred_check_branch
      %87 = sbr.rel (0) target = $region37
    $region36: #{tpu_custom_call.1} parent=1 // pred_region
      _
    $region37: #{tpu_custom_call.1} parent=1 // pred_fallthru
      _
    // Predicated region
    $region38: #{tpu_custom_call.1} parent=1 // pred_check
      _
    $region39: #{tpu_custom_call.1} parent=1 // pred_check_branch
      %89 = sbr.rel (0) target = $region41
    $region40: #{tpu_custom_call.1} parent=1 // pred_region
      %90 = dma.done [#allocation3], 2048
    $region41: #{tpu_custom_call.1} parent=1 // pred_fallthru
      _
    // Predicated region
    $region42: #{tpu_custom_call.1} parent=1 // pred_check
      _
    $region43: #{tpu_custom_call.1} parent=1 // pred_check_branch
      %92 = sbr.rel (0) target = $region45
    $region44: #{tpu_custom_call.1} parent=1 // pred_region
      %93 = dma.done [#allocation6], 2048
    $region45: #{tpu_custom_call.1} parent=1 // pred_fallthru
      _
    // Predicated region
    $region46: #{tpu_custom_call.1} parent=1 // pred_check
      _
    $region47: #{tpu_custom_call.1} parent=1 // pred_check_branch
      %95 = sbr.rel (0) target = $region49
    $region48: #{tpu_custom_call.1} parent=1 // pred_region
      %96 = dma.done [#allocation6], 2048
    $region49: #{tpu_custom_call.1} parent=1 // pred_fallthru
      _
    // Predicated region
    $region50: #{tpu_custom_call.1} parent=1 // pred_check
      _
    $region51: #{tpu_custom_call.1} parent=1 // pred_check_branch
      %98 = sbr.rel (0) target = $region53
    $region52: #{tpu_custom_call.1} parent=1 // pred_region
      %99 = dma.done [#allocation9], 1024
    $region53: #{tpu_custom_call.1} parent=1 // pred_fallthru
      _
    // Predicated region
    $region54: #{tpu_custom_call.1} parent=1 // pred_check
      _
    $region55: #{tpu_custom_call.1} parent=1 // pred_check_branch
      %101 = sbr.rel (0) target = $region57
    $region56: #{tpu_custom_call.1} parent=1 // pred_region
      %102 = dma.done [#allocation9], 1024
    $region57: #{tpu_custom_call.1} parent=1 // pred_fallthru
      _
    %v104 = vld [vmem:[#allocation2] sm:$0xff]
    %v105 = vld [vmem:[#allocation2 + $0x8] sm:$0xff]
    %v106 = vld [vmem:[#allocation2 + $0x10] sm:$0xff]
    %v107 = vld [vmem:[#allocation2 + $0x18] sm:$0xff]
    %v108 = vld [vmem:[#allocation2 + $0x20] sm:$0xff]
    %v109 = vld [vmem:[#allocation2 + $0x28] sm:$0xff]
    %v110 = vld [vmem:[#allocation2 + $0x30] sm:$0xff]
    %v111 = vld [vmem:[#allocation2 + $0x38] sm:$0xff]
    %v112 = vld [vmem:[#allocation2 + $0x40] sm:$0xff]
    %v113 = vld [vmem:[#allocation2 + $0x48] sm:$0xff]
    %v114 = vld [vmem:[#allocation2 + $0x50] sm:$0xff]
    %v115 = vld [vmem:[#allocation2 + $0x58] sm:$0xff]
    %v116 = vld [vmem:[#allocation2 + $0x60] sm:$0xff]
    %v117 = vld [vmem:[#allocation2 + $0x68] sm:$0xff]
    %v118 = vld [vmem:[#allocation2 + $0x70] sm:$0xff]
    %v119 = vld [vmem:[#allocation2 + $0x78] sm:$0xff]
    %v120 = vpack.c.bf16 %v105, %v104
    %v121 = vpack.c.bf16 %v107, %v106
    %v122 = vpack.c.bf16 %v109, %v108
    %v123 = vpack.c.bf16 %v111, %v110
    %v124 = vpack.c.bf16 %v113, %v112
    %v125 = vpack.c.bf16 %v115, %v114
    %v126 = vpack.c.bf16 %v117, %v116
    %v127 = vpack.c.bf16 %v119, %v118
    %v128 = vld [vmem:[#allocation5] sm:$0xff]
    %v129 = vld [vmem:[#allocation5 + $0x8] sm:$0xff]
    %v130 = vld [vmem:[#allocation5 + $0x10] sm:$0xff]
    %v131 = vld [vmem:[#allocation5 + $0x18] sm:$0xff]
    %v132 = vld [vmem:[#allocation5 + $0x20] sm:$0xff]
    %v133 = vld [vmem:[#allocation5 + $0x28] sm:$0xff]
    %v134 = vld [vmem:[#allocation5 + $0x30] sm:$0xff]
    %v135 = vld [vmem:[#allocation5 + $0x38] sm:$0xff]
    %v136 = vld [vmem:[#allocation5 + $0x40] sm:$0xff]
    %v137 = vld [vmem:[#allocation5 + $0x48] sm:$0xff]
    %v138 = vld [vmem:[#allocation5 + $0x50] sm:$0xff]
    %v139 = vld [vmem:[#allocation5 + $0x58] sm:$0xff]
    %v140 = vld [vmem:[#allocation5 + $0x60] sm:$0xff]
    %v141 = vld [vmem:[#allocation5 + $0x68] sm:$0xff]
    %v142 = vld [vmem:[#allocation5 + $0x70] sm:$0xff]
    %v143 = vld [vmem:[#allocation5 + $0x78] sm:$0xff]
    %v144 = vld [vmem:[%s2] sm:$0x3]
    %v146 = vlaneseq
    %v147 = vshrl.u32 %v146, 7
    %v148 = vsub.s32 0, %v147
    %v149 = vrot.slane %v144, %v148
    %v150 = vlaneseq
    %v151 = vshrl.u32 %v150, 7
    %v152 = vsub.s32 1, %v151
    %v153 = vrot.slane %v144, %v152
    %v172 = vunpack.c.l.b16 %v128
    %v173 = vunpack.c.h.b16 %v128
    %v174 = vunpack.c.l.b16 %v129
    %v175 = vunpack.c.h.b16 %v129
    %v176 = vunpack.c.l.b16 %v130
    %v177 = vunpack.c.h.b16 %v130
    %v178 = vunpack.c.l.b16 %v131
    %v179 = vunpack.c.h.b16 %v131
    %v180 = vunpack.c.l.b16 %v132
    %v181 = vunpack.c.h.b16 %v132
    %v182 = vunpack.c.l.b16 %v133
    %v183 = vunpack.c.h.b16 %v133
    %v184 = vunpack.c.l.b16 %v134
    %v185 = vunpack.c.h.b16 %v134
    %v186 = vunpack.c.l.b16 %v135
    %v187 = vunpack.c.h.b16 %v135
    %v188 = vunpack.c.l.b16 %v136
    %v189 = vunpack.c.h.b16 %v136
    %v190 = vunpack.c.l.b16 %v137
    %v191 = vunpack.c.h.b16 %v137
    %v192 = vunpack.c.l.b16 %v138
    %v193 = vunpack.c.h.b16 %v138
    %v194 = vunpack.c.l.b16 %v139
    %v195 = vunpack.c.h.b16 %v139
    %v196 = vunpack.c.l.b16 %v140
    %v197 = vunpack.c.h.b16 %v140
    %v198 = vunpack.c.l.b16 %v141
    %v199 = vunpack.c.h.b16 %v141
    %v200 = vunpack.c.l.b16 %v142
    %v201 = vunpack.c.h.b16 %v142
    %v202 = vunpack.c.l.b16 %v143
    %v203 = vunpack.c.h.b16 %v143
    %v204 = vpack.c.b16 %v174, %v172
    %v205 = vpack.c.b16 %v175, %v173
    %v206 = vpack.c.b16 %v178, %v176
    %v207 = vpack.c.b16 %v179, %v177
    %v208 = vpack.c.b16 %v182, %v180
    %v209 = vpack.c.b16 %v183, %v181
    %v210 = vpack.c.b16 %v186, %v184
    %v211 = vpack.c.b16 %v187, %v185
    %v212 = vpack.c.b16 %v190, %v188
    %v213 = vpack.c.b16 %v191, %v189
    %v214 = vpack.c.b16 %v194, %v192
    %v215 = vpack.c.b16 %v195, %v193
    %v216 = vpack.c.b16 %v198, %v196
    %v217 = vpack.c.b16 %v199, %v197
    %v218 = vpack.c.b16 %v202, %v200
    %v219 = vpack.c.b16 %v203, %v201
    %236 = vmatprep.subr.bf16.mxu0 %v219
    %237 = vmatpush1.bf16.msra.mxu0 %v218
    %238 = vmatprep.subr.bf16.mxu0 %v217
    %239 = vmatpush1.bf16.msra.mxu0 %v216
    %240 = vmatprep.subr.bf16.mxu0 %v215
    %241 = vmatpush1.bf16.msra.mxu0 %v214
    %242 = vmatprep.subr.bf16.mxu0 %v213
    %243 = vmatpush1.bf16.msra.mxu0 %v212
    %244 = vmatprep.subr.bf16.mxu0 %v211
    %245 = vmatpush1.bf16.msra.mxu0 %v210
    %246 = vmatprep.subr.bf16.mxu0 %v209
    %247 = vmatpush1.bf16.msra.mxu0 %v208
    %248 = vmatprep.subr.bf16.mxu0 %v207
    %249 = vmatpush1.bf16.msra.mxu0 %v206
    %250 = vmatprep.subr.bf16.mxu0 %v205
    %251 = vmatpush1.bf16.msra.mxu0 %v204
    %252 = vmatprep.subr.bf16.mxu0 0
    %253 = vmatpush2.bf16.msra.mxu0 0
    %254 = vmatprep.subr.bf16.mxu0 0
    %255 = vmatpush2.bf16.msra.mxu0 0
    %256 = vmatprep.subr.bf16.mxu0 0
    %257 = vmatpush2.bf16.msra.mxu0 0
    %258 = vmatprep.subr.bf16.mxu0 0
    %259 = vmatpush2.bf16.msra.mxu0 0
    %260 = vmatprep.subr.bf16.mxu0 0
    %261 = vmatpush2.bf16.msra.mxu0 0
    %262 = vmatprep.subr.bf16.mxu0 0
    %263 = vmatpush2.bf16.msra.mxu0 0
    %264 = vmatprep.subr.bf16.mxu0 0
    %265 = vmatpush2.bf16.msra.mxu0 0
    %266 = vmatprep.subr.bf16.mxu0 0
    %267 = vmatpush2.bf16.msra.mxu0 0
    %268 = vmatprep.mubr.bf16.mxu0 0
    %269 = vmatmul.mubr.bf16.gmra.mxu0 %v120
    %v270 = vpop.f32.mrf.mxu0
    %v271 = vadd.f32 %v149, %v270
    %v272 = vpop.f32.mrf.mxu0
    %v273 = vadd.f32 %v153, %v272
    %v274 = vpop.f32.mrf.mxu0
    %v275 = vadd.f32 %v149, %v274
    %v276 = vpop.f32.mrf.mxu0
    %v277 = vadd.f32 %v153, %v276
    %278 = vmatprep.mubr.bf16.mxu0 0
    %279 = vmatmul.mubr.bf16.gmra.mxu0 %v121
    %v280 = vpop.f32.mrf.mxu0
    %v281 = vadd.f32 %v149, %v280
    %v282 = vpop.f32.mrf.mxu0
    %v283 = vadd.f32 %v153, %v282
    %v284 = vpop.f32.mrf.mxu0
    %v285 = vadd.f32 %v149, %v284
    %v286 = vpop.f32.mrf.mxu0
    %v287 = vadd.f32 %v153, %v286
    %288 = vmatprep.mubr.bf16.mxu0 0
    %289 = vmatmul.mubr.bf16.gmra.mxu0 %v122
    %v290 = vpop.f32.mrf.mxu0
    %v291 = vadd.f32 %v149, %v290
    %v292 = vpop.f32.mrf.mxu0
    %v293 = vadd.f32 %v153, %v292
    %v294 = vpop.f32.mrf.mxu0
    %v295 = vadd.f32 %v149, %v294
    %v296 = vpop.f32.mrf.mxu0
    %v297 = vadd.f32 %v153, %v296
    %298 = vmatprep.mubr.bf16.mxu0 0
    %299 = vmatmul.mubr.bf16.gmra.mxu0 %v123
    %v300 = vpop.f32.mrf.mxu0
    %v301 = vadd.f32 %v149, %v300
    %v302 = vpop.f32.mrf.mxu0
    %v303 = vadd.f32 %v153, %v302
    %v304 = vpop.f32.mrf.mxu0
    %v305 = vadd.f32 %v149, %v304
    %v306 = vpop.f32.mrf.mxu0
    %v307 = vadd.f32 %v153, %v306
    %308 = vmatprep.mubr.bf16.mxu0 0
    %309 = vmatmul.mubr.bf16.gmra.mxu0 %v124
    %v310 = vpop.f32.mrf.mxu0
    %v311 = vadd.f32 %v149, %v310
    %v312 = vpop.f32.mrf.mxu0
    %v313 = vadd.f32 %v153, %v312
    %v314 = vpop.f32.mrf.mxu0
    %v315 = vadd.f32 %v149, %v314
    %v316 = vpop.f32.mrf.mxu0
    %v317 = vadd.f32 %v153, %v316
    %318 = vmatprep.mubr.bf16.mxu0 0
    %319 = vmatmul.mubr.bf16.gmra.mxu0 %v125
    %v320 = vpop.f32.mrf.mxu0
    %v321 = vadd.f32 %v149, %v320
    %v322 = vpop.f32.mrf.mxu0
    %v323 = vadd.f32 %v153, %v322
    %v324 = vpop.f32.mrf.mxu0
    %v325 = vadd.f32 %v149, %v324
    %v326 = vpop.f32.mrf.mxu0
    %v327 = vadd.f32 %v153, %v326
    %328 = vmatprep.mubr.bf16.mxu0 0
    %329 = vmatmul.mubr.bf16.gmra.mxu0 %v126
    %v330 = vpop.f32.mrf.mxu0
    %v331 = vadd.f32 %v149, %v330
    %v332 = vpop.f32.mrf.mxu0
    %v333 = vadd.f32 %v153, %v332
    %v334 = vpop.f32.mrf.mxu0
    %v335 = vadd.f32 %v149, %v334
    %v336 = vpop.f32.mrf.mxu0
    %v337 = vadd.f32 %v153, %v336
    %338 = vmatprep.mubr.bf16.mxu0 0
    %339 = vmatmul.mubr.bf16.gmra.mxu0 %v127
    %v340 = vpop.f32.mrf.mxu0
    %v341 = vadd.f32 %v149, %v340
    %v342 = vpop.f32.mrf.mxu0
    %v343 = vadd.f32 %v153, %v342
    %v344 = vpop.f32.mrf.mxu0
    %v345 = vadd.f32 %v149, %v344
    %v346 = vpop.f32.mrf.mxu0
    %v347 = vadd.f32 %v153, %v346
    %348 = vdwg.mxu0
    %v349 = vmax.f32 %v271, 0.0
    %v350 = vmax.f32 %v273, 0.0
    %v351 = vmax.f32 %v275, 0.0
    %v352 = vmax.f32 %v277, 0.0
    %v353 = vmax.f32 %v281, 0.0
    %v354 = vmax.f32 %v283, 0.0
    %v355 = vmax.f32 %v285, 0.0
    %v356 = vmax.f32 %v287, 0.0
    %v357 = vmax.f32 %v291, 0.0
    %v358 = vmax.f32 %v293, 0.0
    %v359 = vmax.f32 %v295, 0.0
    %v360 = vmax.f32 %v297, 0.0
    %v361 = vmax.f32 %v301, 0.0
    %v362 = vmax.f32 %v303, 0.0
    %v363 = vmax.f32 %v305, 0.0
    %v364 = vmax.f32 %v307, 0.0
    %v365 = vmax.f32 %v311, 0.0
    %v366 = vmax.f32 %v313, 0.0
    %v367 = vmax.f32 %v315, 0.0
    %v368 = vmax.f32 %v317, 0.0
    %v369 = vmax.f32 %v321, 0.0
    %v370 = vmax.f32 %v323, 0.0
    %v371 = vmax.f32 %v325, 0.0
    %v372 = vmax.f32 %v327, 0.0
    %v373 = vmax.f32 %v331, 0.0
    %v374 = vmax.f32 %v333, 0.0
    %v375 = vmax.f32 %v335, 0.0
    %v376 = vmax.f32 %v337, 0.0
    %v377 = vmax.f32 %v341, 0.0
    %v378 = vmax.f32 %v343, 0.0
    %v379 = vmax.f32 %v345, 0.0
    %v380 = vmax.f32 %v347, 0.0
    %v381 = vpack.c.bf16 %v351, %v349
    %v382 = vpack.c.bf16 %v352, %v350
    %v383 = vpack.c.bf16 %v355, %v353
    %v384 = vpack.c.bf16 %v356, %v354
    %v385 = vpack.c.bf16 %v359, %v357
    %v386 = vpack.c.bf16 %v360, %v358
    %v387 = vpack.c.bf16 %v363, %v361
    %v388 = vpack.c.bf16 %v364, %v362
    %v389 = vpack.c.bf16 %v367, %v365
    %v390 = vpack.c.bf16 %v368, %v366
    %v391 = vpack.c.bf16 %v371, %v369
    %v392 = vpack.c.bf16 %v372, %v370
    %v393 = vpack.c.bf16 %v375, %v373
    %v394 = vpack.c.bf16 %v376, %v374
    %v395 = vpack.c.bf16 %v379, %v377
    %v396 = vpack.c.bf16 %v380, %v378
    %v397 = vld [vmem:[#allocation7] sm:$0xf]
    %v398 = vld [vmem:[#allocation7 + $0x4] sm:$0xf]
    %v399 = vld [vmem:[#allocation7 + $0x8] sm:$0xf]
    %v400 = vld [vmem:[#allocation7 + $0xc] sm:$0xf]
    %v401 = vld [vmem:[#allocation7 + $0x10] sm:$0xf]
    %v402 = vld [vmem:[#allocation7 + $0x14] sm:$0xf]
    %v403 = vld [vmem:[#allocation7 + $0x18] sm:$0xf]
    %v404 = vld [vmem:[#allocation7 + $0x1c] sm:$0xf]
    %v405 = vld [vmem:[#allocation7 + $0x20] sm:$0xf]
    %v406 = vld [vmem:[#allocation7 + $0x24] sm:$0xf]
    %v407 = vld [vmem:[#allocation7 + $0x28] sm:$0xf]
    %v408 = vld [vmem:[#allocation7 + $0x2c] sm:$0xf]
    %v409 = vld [vmem:[#allocation7 + $0x30] sm:$0xf]
    %v410 = vld [vmem:[#allocation7 + $0x34] sm:$0xf]
    %v411 = vld [vmem:[#allocation7 + $0x38] sm:$0xf]
    %v412 = vld [vmem:[#allocation7 + $0x3c] sm:$0xf]
    %v413 = vld [vmem:[#allocation7 + $0x40] sm:$0xf]
    %v414 = vld [vmem:[#allocation7 + $0x44] sm:$0xf]
    %v415 = vld [vmem:[#allocation7 + $0x48] sm:$0xf]
    %v416 = vld [vmem:[#allocation7 + $0x4c] sm:$0xf]
    %v417 = vld [vmem:[#allocation7 + $0x50] sm:$0xf]
    %v418 = vld [vmem:[#allocation7 + $0x54] sm:$0xf]
    %v419 = vld [vmem:[#allocation7 + $0x58] sm:$0xf]
    %v420 = vld [vmem:[#allocation7 + $0x5c] sm:$0xf]
    %v421 = vld [vmem:[#allocation7 + $0x60] sm:$0xf]
    %v422 = vld [vmem:[#allocation7 + $0x64] sm:$0xf]
    %v423 = vld [vmem:[#allocation7 + $0x68] sm:$0xf]
    %v424 = vld [vmem:[#allocation7 + $0x6c] sm:$0xf]
    %v425 = vld [vmem:[#allocation7 + $0x70] sm:$0xf]
    %v426 = vld [vmem:[#allocation7 + $0x74] sm:$0xf]
    %v427 = vld [vmem:[#allocation7 + $0x78] sm:$0xf]
    %v428 = vld [vmem:[#allocation7 + $0x7c] sm:$0xf]
    %v429 = vld [vmem:[%s4] sm:$0x1]
    %v431 = vlaneseq
    %v432 = vshrl.u32 %v431, 7
    %v433 = vsub.s32 0, %v432
    %v434 = vrot.slane %v429, %v433
    %v468 = vunpack.c.l.b16 %v397
    %v469 = vunpack.c.l.b16 %v398
    %v470 = vunpack.c.l.b16 %v399
    %v471 = vunpack.c.l.b16 %v400
    %v472 = vunpack.c.l.b16 %v401
    %v473 = vunpack.c.l.b16 %v402
    %v474 = vunpack.c.l.b16 %v403
    %v475 = vunpack.c.l.b16 %v404
    %v476 = vunpack.c.l.b16 %v405
    %v477 = vunpack.c.l.b16 %v406
    %v478 = vunpack.c.l.b16 %v407
    %v479 = vunpack.c.l.b16 %v408
    %v480 = vunpack.c.l.b16 %v409
    %v481 = vunpack.c.l.b16 %v410
    %v482 = vunpack.c.l.b16 %v411
    %v483 = vunpack.c.l.b16 %v412
    %v484 = vunpack.c.l.b16 %v413
    %v485 = vunpack.c.l.b16 %v414
    %v486 = vunpack.c.l.b16 %v415
    %v487 = vunpack.c.l.b16 %v416
    %v488 = vunpack.c.l.b16 %v417
    %v489 = vunpack.c.l.b16 %v418
    %v490 = vunpack.c.l.b16 %v419
    %v491 = vunpack.c.l.b16 %v420
    %v492 = vunpack.c.l.b16 %v421
    %v493 = vunpack.c.l.b16 %v422
    %v494 = vunpack.c.l.b16 %v423
    %v495 = vunpack.c.l.b16 %v424
    %v496 = vunpack.c.l.b16 %v425
    %v497 = vunpack.c.l.b16 %v426
    %v498 = vunpack.c.l.b16 %v427
    %v499 = vunpack.c.l.b16 %v428
    %v500 = vpack.c.b16 %v469, %v468
    %v501 = vpack.c.b16 %v471, %v470
    %v502 = vpack.c.b16 %v473, %v472
    %v503 = vpack.c.b16 %v475, %v474
    %v504 = vpack.c.b16 %v477, %v476
    %v505 = vpack.c.b16 %v479, %v478
    %v506 = vpack.c.b16 %v481, %v480
    %v507 = vpack.c.b16 %v483, %v482
    %v508 = vpack.c.b16 %v485, %v484
    %v509 = vpack.c.b16 %v487, %v486
    %v510 = vpack.c.b16 %v489, %v488
    %v511 = vpack.c.b16 %v491, %v490
    %v512 = vpack.c.b16 %v493, %v492
    %v513 = vpack.c.b16 %v495, %v494
    %v514 = vpack.c.b16 %v497, %v496
    %v515 = vpack.c.b16 %v499, %v498
    %532 = vmatprep.subr.bf16.mxu0 0
    %533 = vmatpush1.bf16.msra.mxu0 %v507
    %534 = vmatprep.subr.bf16.mxu0 0
    %535 = vmatpush1.bf16.msra.mxu0 %v506
    %536 = vmatprep.subr.bf16.mxu0 0
    %537 = vmatpush1.bf16.msra.mxu0 %v505
    %538 = vmatprep.subr.bf16.mxu0 0
    %539 = vmatpush1.bf16.msra.mxu0 %v504
    %540 = vmatprep.subr.bf16.mxu0 0
    %541 = vmatpush1.bf16.msra.mxu0 %v503
    %542 = vmatprep.subr.bf16.mxu0 0
    %543 = vmatpush1.bf16.msra.mxu0 %v502
    %544 = vmatprep.subr.bf16.mxu0 0
    %545 = vmatpush1.bf16.msra.mxu0 %v501
    %546 = vmatprep.subr.bf16.mxu0 0
    %547 = vmatpush1.bf16.msra.mxu0 %v500
    %548 = vmatprep.subr.bf16.mxu0 0
    %549 = vmatpush2.bf16.msra.mxu0 %v515
    %550 = vmatprep.subr.bf16.mxu0 0
    %551 = vmatpush2.bf16.msra.mxu0 %v514
    %552 = vmatprep.subr.bf16.mxu0 0
    %553 = vmatpush2.bf16.msra.mxu0 %v513
    %554 = vmatprep.subr.bf16.mxu0 0
    %555 = vmatpush2.bf16.msra.mxu0 %v512
    %556 = vmatprep.subr.bf16.mxu0 0
    %557 = vmatpush2.bf16.msra.mxu0 %v511
    %558 = vmatprep.subr.bf16.mxu0 0
    %559 = vmatpush2.bf16.msra.mxu0 %v510
    %560 = vmatprep.subr.bf16.mxu0 0
    %561 = vmatpush2.bf16.msra.mxu0 %v509
    %562 = vmatprep.subr.bf16.mxu0 0
    %563 = vmatpush2.bf16.msra.mxu0 %v508
    %564 = vmatprep.mubr.bf16.mxu0 %v382
    %565 = vmatmul.mubr.bf16.gmra.mxu0 %v381
    %v566 = vpop.f32.mrf.mxu0
    %v567 = vadd.f32 %v434, %v566
    %v568 = vpop.f32.mrf.mxu0
    %v569 = vpop.f32.mrf.mxu0
    %v570 = vadd.f32 %v434, %v569
    %v571 = vpop.f32.mrf.mxu0
    %572 = vmatprep.mubr.bf16.mxu0 %v384
    %573 = vmatmul.mubr.bf16.gmra.mxu0 %v383
    %v574 = vpop.f32.mrf.mxu0
    %v575 = vadd.f32 %v434, %v574
    %v576 = vpop.f32.mrf.mxu0
    %v577 = vpop.f32.mrf.mxu0
    %v578 = vadd.f32 %v434, %v577
    %v579 = vpop.f32.mrf.mxu0
    %580 = vmatprep.mubr.bf16.mxu0 %v386
    %581 = vmatmul.mubr.bf16.gmra.mxu0 %v385
    %v582 = vpop.f32.mrf.mxu0
    %v583 = vadd.f32 %v434, %v582
    %v584 = vpop.f32.mrf.mxu0
    %v585 = vpop.f32.mrf.mxu0
    %v586 = vadd.f32 %v434, %v585
    %v587 = vpop.f32.mrf.mxu0
    %588 = vmatprep.mubr.bf16.mxu0 %v388
    %589 = vmatmul.mubr.bf16.gmra.mxu0 %v387
    %v590 = vpop.f32.mrf.mxu0
    %v591 = vadd.f32 %v434, %v590
    %v592 = vpop.f32.mrf.mxu0
    %v593 = vpop.f32.mrf.mxu0
    %v594 = vadd.f32 %v434, %v593
    %v595 = vpop.f32.mrf.mxu0
    %596 = vmatprep.mubr.bf16.mxu0 %v390
    %597 = vmatmul.mubr.bf16.gmra.mxu0 %v389
    %v598 = vpop.f32.mrf.mxu0
    %v599 = vadd.f32 %v434, %v598
    %v600 = vpop.f32.mrf.mxu0
    %v601 = vpop.f32.mrf.mxu0
    %v602 = vadd.f32 %v434, %v601
    %v603 = vpop.f32.mrf.mxu0
    %604 = vmatprep.mubr.bf16.mxu0 %v392
    %605 = vmatmul.mubr.bf16.gmra.mxu0 %v391
    %v606 = vpop.f32.mrf.mxu0
    %v607 = vadd.f32 %v434, %v606
    %v608 = vpop.f32.mrf.mxu0
    %v609 = vpop.f32.mrf.mxu0
    %v610 = vadd.f32 %v434, %v609
    %v611 = vpop.f32.mrf.mxu0
    %612 = vmatprep.mubr.bf16.mxu0 %v394
    %613 = vmatmul.mubr.bf16.gmra.mxu0 %v393
    %v614 = vpop.f32.mrf.mxu0
    %v615 = vadd.f32 %v434, %v614
    %v616 = vpop.f32.mrf.mxu0
    %v617 = vpop.f32.mrf.mxu0
    %v618 = vadd.f32 %v434, %v617
    %v619 = vpop.f32.mrf.mxu0
    %620 = vmatprep.mubr.bf16.mxu0 %v396
    %621 = vmatmul.mubr.bf16.gmra.mxu0 %v395
    %v622 = vpop.f32.mrf.mxu0
    %v623 = vadd.f32 %v434, %v622
    %v624 = vpop.f32.mrf.mxu0
    %v625 = vpop.f32.mrf.mxu0
    %v626 = vadd.f32 %v434, %v625
    %v627 = vpop.f32.mrf.mxu0
    %628 = vdwg.mxu0
    %v629 = vmax.f32 %v567, 0.0
    %v630 = vmax.f32 %v570, 0.0
    %v631 = vmax.f32 %v575, 0.0
    %v632 = vmax.f32 %v578, 0.0
    %v633 = vmax.f32 %v583, 0.0
    %v634 = vmax.f32 %v586, 0.0
    %v635 = vmax.f32 %v591, 0.0
    %v636 = vmax.f32 %v594, 0.0
    %v637 = vmax.f32 %v599, 0.0
    %v638 = vmax.f32 %v602, 0.0
    %v639 = vmax.f32 %v607, 0.0
    %v640 = vmax.f32 %v610, 0.0
    %v641 = vmax.f32 %v615, 0.0
    %v642 = vmax.f32 %v618, 0.0
    %v643 = vmax.f32 %v623, 0.0
    %v644 = vmax.f32 %v626, 0.0
    %v645 = vpack.c.bf16 %v630, %v629
    %v646 = vpack.c.bf16 %v632, %v631
    %v647 = vpack.c.bf16 %v634, %v633
    %v648 = vpack.c.bf16 %v636, %v635
    %v649 = vpack.c.bf16 %v638, %v637
    %v650 = vpack.c.bf16 %v640, %v639
    %v651 = vpack.c.bf16 %v642, %v641
    %v652 = vpack.c.bf16 %v644, %v643
    %v653 = vld [vmem:[#allocation8] sm:$0xf]
    %v654 = vld [vmem:[#allocation8 + $0x4] sm:$0xf]
    %v655 = vld [vmem:[#allocation8 + $0x8] sm:$0xf]
    %v656 = vld [vmem:[#allocation8 + $0xc] sm:$0xf]
    %v657 = vld [vmem:[#allocation8 + $0x10] sm:$0xf]
    %v658 = vld [vmem:[#allocation8 + $0x14] sm:$0xf]
    %v659 = vld [vmem:[#allocation8 + $0x18] sm:$0xf]
    %v660 = vld [vmem:[#allocation8 + $0x1c] sm:$0xf]
    %v661 = vld [vmem:[#allocation8 + $0x20] sm:$0xf]
    %v662 = vld [vmem:[#allocation8 + $0x24] sm:$0xf]
    %v663 = vld [vmem:[#allocation8 + $0x28] sm:$0xf]
    %v664 = vld [vmem:[#allocation8 + $0x2c] sm:$0xf]
    %v665 = vld [vmem:[#allocation8 + $0x30] sm:$0xf]
    %v666 = vld [vmem:[#allocation8 + $0x34] sm:$0xf]
    %v667 = vld [vmem:[#allocation8 + $0x38] sm:$0xf]
    %v668 = vld [vmem:[#allocation8 + $0x3c] sm:$0xf]
    %v669 = vld [vmem:[%s6] sm:$0x1]
    %v671 = vlaneseq
    %v672 = vshrl.u32 %v671, 7
    %v673 = vsub.s32 0, %v672
    %v674 = vrot.slane %v669, %v673
    %v692 = vunpack.c.l.b16 %v653
    %v693 = vunpack.c.l.b16 %v654
    %v694 = vunpack.c.l.b16 %v655
    %v695 = vunpack.c.l.b16 %v656
    %v696 = vunpack.c.l.b16 %v657
    %v697 = vunpack.c.l.b16 %v658
    %v698 = vunpack.c.l.b16 %v659
    %v699 = vunpack.c.l.b16 %v660
    %v700 = vunpack.c.l.b16 %v661
    %v701 = vunpack.c.l.b16 %v662
    %v702 = vunpack.c.l.b16 %v663
    %v703 = vunpack.c.l.b16 %v664
    %v704 = vunpack.c.l.b16 %v665
    %v705 = vunpack.c.l.b16 %v666
    %v706 = vunpack.c.l.b16 %v667
    %v707 = vunpack.c.l.b16 %v668
    %v708 = vpack.c.b16 %v693, %v692
    %v709 = vpack.c.b16 %v695, %v694
    %v710 = vpack.c.b16 %v697, %v696
    %v711 = vpack.c.b16 %v699, %v698
    %v712 = vpack.c.b16 %v701, %v700
    %v713 = vpack.c.b16 %v703, %v702
    %v714 = vpack.c.b16 %v705, %v704
    %v715 = vpack.c.b16 %v707, %v706
    %724 = vmatprep.subr.bf16.mxu0 0
    %725 = vmatpush1.bf16.msra.mxu0 %v715
    %726 = vmatprep.subr.bf16.mxu0 0
    %727 = vmatpush1.bf16.msra.mxu0 %v714
    %728 = vmatprep.subr.bf16.mxu0 0
    %729 = vmatpush1.bf16.msra.mxu0 %v713
    %730 = vmatprep.subr.bf16.mxu0 0
    %731 = vmatpush1.bf16.msra.mxu0 %v712
    %732 = vmatprep.subr.bf16.mxu0 0
    %733 = vmatpush1.bf16.msra.mxu0 %v711
    %734 = vmatprep.subr.bf16.mxu0 0
    %735 = vmatpush1.bf16.msra.mxu0 %v710
    %736 = vmatprep.subr.bf16.mxu0 0
    %737 = vmatpush1.bf16.msra.mxu0 %v709
    %738 = vmatprep.subr.bf16.mxu0 0
    %739 = vmatpush1.bf16.msra.mxu0 %v708
    %740 = vmatprep.subr.bf16.mxu0 0
    %741 = vmatpush2.bf16.msra.mxu0 0
    %742 = vmatprep.subr.bf16.mxu0 0
    %743 = vmatpush2.bf16.msra.mxu0 0
    %744 = vmatprep.subr.bf16.mxu0 0
    %745 = vmatpush2.bf16.msra.mxu0 0
    %746 = vmatprep.subr.bf16.mxu0 0
    %747 = vmatpush2.bf16.msra.mxu0 0
    %748 = vmatprep.subr.bf16.mxu0 0
    %749 = vmatpush2.bf16.msra.mxu0 0
    %750 = vmatprep.subr.bf16.mxu0 0
    %751 = vmatpush2.bf16.msra.mxu0 0
    %752 = vmatprep.subr.bf16.mxu0 0
    %753 = vmatpush2.bf16.msra.mxu0 0
    %754 = vmatprep.subr.bf16.mxu0 0
    %755 = vmatpush2.bf16.msra.mxu0 0
    %756 = vmatprep.mubr.bf16.mxu0 0
    %757 = vmatmul.mubr.bf16.gmra.mxu0 %v645
    %v758 = vpop.f32.mrf.mxu0
    %v759 = vadd.f32 %v674, %v758
    %v760 = vpop.f32.mrf.mxu0
    %v761 = vpop.f32.mrf.mxu0
    %v762 = vadd.f32 %v674, %v761
    %v763 = vpop.f32.mrf.mxu0
    %764 = vmatprep.mubr.bf16.mxu0 0
    %765 = vmatmul.mubr.bf16.gmra.mxu0 %v646
    %v766 = vpop.f32.mrf.mxu0
    %v767 = vadd.f32 %v674, %v766
    %v768 = vpop.f32.mrf.mxu0
    %v769 = vpop.f32.mrf.mxu0
    %v770 = vadd.f32 %v674, %v769
    %v771 = vpop.f32.mrf.mxu0
    %772 = vmatprep.mubr.bf16.mxu0 0
    %773 = vmatmul.mubr.bf16.gmra.mxu0 %v647
    %v774 = vpop.f32.mrf.mxu0
    %v775 = vadd.f32 %v674, %v774
    %v776 = vpop.f32.mrf.mxu0
    %v777 = vpop.f32.mrf.mxu0
    %v778 = vadd.f32 %v674, %v777
    %v779 = vpop.f32.mrf.mxu0
    %780 = vmatprep.mubr.bf16.mxu0 0
    %781 = vmatmul.mubr.bf16.gmra.mxu0 %v648
    %v782 = vpop.f32.mrf.mxu0
    %v783 = vadd.f32 %v674, %v782
    %v784 = vpop.f32.mrf.mxu0
    %v785 = vpop.f32.mrf.mxu0
    %v786 = vadd.f32 %v674, %v785
    %v787 = vpop.f32.mrf.mxu0
    %788 = vmatprep.mubr.bf16.mxu0 0
    %789 = vmatmul.mubr.bf16.gmra.mxu0 %v649
    %v790 = vpop.f32.mrf.mxu0
    %v791 = vadd.f32 %v674, %v790
    %v792 = vpop.f32.mrf.mxu0
    %v793 = vpop.f32.mrf.mxu0
    %v794 = vadd.f32 %v674, %v793
    %v795 = vpop.f32.mrf.mxu0
    %796 = vmatprep.mubr.bf16.mxu0 0
    %797 = vmatmul.mubr.bf16.gmra.mxu0 %v650
    %v798 = vpop.f32.mrf.mxu0
    %v799 = vadd.f32 %v674, %v798
    %v800 = vpop.f32.mrf.mxu0
    %v801 = vpop.f32.mrf.mxu0
    %v802 = vadd.f32 %v674, %v801
    %v803 = vpop.f32.mrf.mxu0
    %804 = vmatprep.mubr.bf16.mxu0 0
    %805 = vmatmul.mubr.bf16.gmra.mxu0 %v651
    %v806 = vpop.f32.mrf.mxu0
    %v807 = vadd.f32 %v674, %v806
    %v808 = vpop.f32.mrf.mxu0
    %v809 = vpop.f32.mrf.mxu0
    %v810 = vadd.f32 %v674, %v809
    %v811 = vpop.f32.mrf.mxu0
    %812 = vmatprep.mubr.bf16.mxu0 0
    %813 = vmatmul.mubr.bf16.gmra.mxu0 %v652
    %v814 = vpop.f32.mrf.mxu0
    %v815 = vadd.f32 %v674, %v814
    %v816 = vpop.f32.mrf.mxu0
    %v817 = vpop.f32.mrf.mxu0
    %v818 = vadd.f32 %v674, %v817
    %v819 = vpop.f32.mrf.mxu0
    %820 = vdwg.mxu0
    %v821 = vmax.f32 %v759, 0.0
    %v822 = vmax.f32 %v762, 0.0
    %v823 = vmax.f32 %v767, 0.0
    %v824 = vmax.f32 %v770, 0.0
    %v825 = vmax.f32 %v775, 0.0
    %v826 = vmax.f32 %v778, 0.0
    %v827 = vmax.f32 %v783, 0.0
    %v828 = vmax.f32 %v786, 0.0
    %v829 = vmax.f32 %v791, 0.0
    %v830 = vmax.f32 %v794, 0.0
    %v831 = vmax.f32 %v799, 0.0
    %v832 = vmax.f32 %v802, 0.0
    %v833 = vmax.f32 %v807, 0.0
    %v834 = vmax.f32 %v810, 0.0
    %v835 = vmax.f32 %v815, 0.0
    %v836 = vmax.f32 %v818, 0.0
    %v837 = vpack.c.bf16 %v822, %v821
    %v838 = vpack.c.bf16 %v824, %v823
    %v839 = vpack.c.bf16 %v826, %v825
    %v840 = vpack.c.bf16 %v828, %v827
    %v841 = vpack.c.bf16 %v830, %v829
    %v842 = vpack.c.bf16 %v832, %v831
    %v843 = vpack.c.bf16 %v834, %v833
    %v844 = vpack.c.bf16 %v836, %v835
    %v845 = vld [vmem:[#allocation10] sm:$0xf]
    %v846 = vld [vmem:[#allocation10 + $0x4] sm:$0xf]
    %v847 = vld [vmem:[#allocation10 + $0x8] sm:$0xf]
    %v848 = vld [vmem:[#allocation10 + $0xc] sm:$0xf]
    %v849 = vld [vmem:[#allocation10 + $0x10] sm:$0xf]
    %v850 = vld [vmem:[#allocation10 + $0x14] sm:$0xf]
    %v851 = vld [vmem:[#allocation10 + $0x18] sm:$0xf]
    %v852 = vld [vmem:[#allocation10 + $0x1c] sm:$0xf]
    %v853 = vld [vmem:[#allocation10 + $0x20] sm:$0xf]
    %v854 = vld [vmem:[#allocation10 + $0x24] sm:$0xf]
    %v855 = vld [vmem:[#allocation10 + $0x28] sm:$0xf]
    %v856 = vld [vmem:[#allocation10 + $0x2c] sm:$0xf]
    %v857 = vld [vmem:[#allocation10 + $0x30] sm:$0xf]
    %v858 = vld [vmem:[#allocation10 + $0x34] sm:$0xf]
    %v859 = vld [vmem:[#allocation10 + $0x38] sm:$0xf]
    %v860 = vld [vmem:[#allocation10 + $0x3c] sm:$0xf]
    %v861 = vld [vmem:[%s8] sm:$0x1]
    %v863 = vlaneseq
    %v864 = vshrl.u32 %v863, 7
    %v865 = vsub.s32 0, %v864
    %v866 = vrot.slane %v861, %v865
    %v884 = vunpack.c.l.b16 %v845
    %v885 = vunpack.c.l.b16 %v846
    %v886 = vunpack.c.l.b16 %v847
    %v887 = vunpack.c.l.b16 %v848
    %v888 = vunpack.c.l.b16 %v849
    %v889 = vunpack.c.l.b16 %v850
    %v890 = vunpack.c.l.b16 %v851
    %v891 = vunpack.c.l.b16 %v852
    %v892 = vunpack.c.l.b16 %v853
    %v893 = vunpack.c.l.b16 %v854
    %v894 = vunpack.c.l.b16 %v855
    %v895 = vunpack.c.l.b16 %v856
    %v896 = vunpack.c.l.b16 %v857
    %v897 = vunpack.c.l.b16 %v858
    %v898 = vunpack.c.l.b16 %v859
    %v899 = vunpack.c.l.b16 %v860
    %v900 = vpack.c.b16 %v885, %v884
    %v901 = vpack.c.b16 %v887, %v886
    %v902 = vpack.c.b16 %v889, %v888
    %v903 = vpack.c.b16 %v891, %v890
    %v904 = vpack.c.b16 %v893, %v892
    %v905 = vpack.c.b16 %v895, %v894
    %v906 = vpack.c.b16 %v897, %v896
    %v907 = vpack.c.b16 %v899, %v898
    %916 = vmatprep.subr.bf16.mxu0 0
    %917 = vmatpush1.bf16.msra.mxu0 %v907
    %918 = vmatprep.subr.bf16.mxu0 0
    %919 = vmatpush1.bf16.msra.mxu0 %v906
    %920 = vmatprep.subr.bf16.mxu0 0
    %921 = vmatpush1.bf16.msra.mxu0 %v905
    %922 = vmatprep.subr.bf16.mxu0 0
    %923 = vmatpush1.bf16.msra.mxu0 %v904
    %924 = vmatprep.subr.bf16.mxu0 0
    %925 = vmatpush1.bf16.msra.mxu0 %v903
    %926 = vmatprep.subr.bf16.mxu0 0
    %927 = vmatpush1.bf16.msra.mxu0 %v902
    %928 = vmatprep.subr.bf16.mxu0 0
    %929 = vmatpush1.bf16.msra.mxu0 %v901
    %930 = vmatprep.subr.bf16.mxu0 0
    %931 = vmatpush1.bf16.msra.mxu0 %v900
    %932 = vmatprep.subr.bf16.mxu0 0
    %933 = vmatpush2.bf16.msra.mxu0 0
    %934 = vmatprep.subr.bf16.mxu0 0
    %935 = vmatpush2.bf16.msra.mxu0 0
    %936 = vmatprep.subr.bf16.mxu0 0
    %937 = vmatpush2.bf16.msra.mxu0 0
    %938 = vmatprep.subr.bf16.mxu0 0
    %939 = vmatpush2.bf16.msra.mxu0 0
    %940 = vmatprep.subr.bf16.mxu0 0
    %941 = vmatpush2.bf16.msra.mxu0 0
    %942 = vmatprep.subr.bf16.mxu0 0
    %943 = vmatpush2.bf16.msra.mxu0 0
    %944 = vmatprep.subr.bf16.mxu0 0
    %945 = vmatpush2.bf16.msra.mxu0 0
    %946 = vmatprep.subr.bf16.mxu0 0
    %947 = vmatpush2.bf16.msra.mxu0 0
    %948 = vmatprep.mubr.bf16.mxu0 0
    %949 = vmatmul.mubr.bf16.gmra.mxu0 %v837
    %v950 = vpop.f32.mrf.mxu0
    %v951 = vadd.f32 %v866, %v950
    %v952 = vpop.f32.mrf.mxu0
    %v953 = vpop.f32.mrf.mxu0
    %v954 = vadd.f32 %v866, %v953
    %v955 = vpop.f32.mrf.mxu0
    %956 = vmatprep.mubr.bf16.mxu0 0
    %957 = vmatmul.mubr.bf16.gmra.mxu0 %v838
    %v958 = vpop.f32.mrf.mxu0
    %v959 = vadd.f32 %v866, %v958
    %v960 = vpop.f32.mrf.mxu0
    %v961 = vpop.f32.mrf.mxu0
    %v962 = vadd.f32 %v866, %v961
    %v963 = vpop.f32.mrf.mxu0
    %964 = vmatprep.mubr.bf16.mxu0 0
    %965 = vmatmul.mubr.bf16.gmra.mxu0 %v839
    %v966 = vpop.f32.mrf.mxu0
    %v967 = vadd.f32 %v866, %v966
    %v968 = vpop.f32.mrf.mxu0
    %v969 = vpop.f32.mrf.mxu0
    %v970 = vadd.f32 %v866, %v969
    %v971 = vpop.f32.mrf.mxu0
    %972 = vmatprep.mubr.bf16.mxu0 0
    %973 = vmatmul.mubr.bf16.gmra.mxu0 %v840
    %v974 = vpop.f32.mrf.mxu0
    %v975 = vadd.f32 %v866, %v974
    %v976 = vpop.f32.mrf.mxu0
    %v977 = vpop.f32.mrf.mxu0
    %v978 = vadd.f32 %v866, %v977
    %v979 = vpop.f32.mrf.mxu0
    %980 = vmatprep.mubr.bf16.mxu0 0
    %981 = vmatmul.mubr.bf16.gmra.mxu0 %v841
    %v982 = vpop.f32.mrf.mxu0
    %v983 = vadd.f32 %v866, %v982
    %v984 = vpop.f32.mrf.mxu0
    %v985 = vpop.f32.mrf.mxu0
    %v986 = vadd.f32 %v866, %v985
    %v987 = vpop.f32.mrf.mxu0
    %988 = vmatprep.mubr.bf16.mxu0 0
    %989 = vmatmul.mubr.bf16.gmra.mxu0 %v842
    %v990 = vpop.f32.mrf.mxu0
    %v991 = vadd.f32 %v866, %v990
    %v992 = vpop.f32.mrf.mxu0
    %v993 = vpop.f32.mrf.mxu0
    %v994 = vadd.f32 %v866, %v993
    %v995 = vpop.f32.mrf.mxu0
    %996 = vmatprep.mubr.bf16.mxu0 0
    %997 = vmatmul.mubr.bf16.gmra.mxu0 %v843
    %v998 = vpop.f32.mrf.mxu0
    %v999 = vadd.f32 %v866, %v998
    %v1000 = vpop.f32.mrf.mxu0
    %v1001 = vpop.f32.mrf.mxu0
    %v1002 = vadd.f32 %v866, %v1001
    %v1003 = vpop.f32.mrf.mxu0
    %1004 = vmatprep.mubr.bf16.mxu0 0
    %1005 = vmatmul.mubr.bf16.gmra.mxu0 %v844
    %v1006 = vpop.f32.mrf.mxu0
    %v1007 = vadd.f32 %v866, %v1006
    %v1008 = vpop.f32.mrf.mxu0
    %v1009 = vpop.f32.mrf.mxu0
    %v1010 = vadd.f32 %v866, %v1009
    %v1011 = vpop.f32.mrf.mxu0
    %1012 = vdwg.mxu0
    %v1013 = vpack.c.bf16 %v954, %v951
    %v1014 = vpack.c.bf16 %v962, %v959
    %v1015 = vpack.c.bf16 %v970, %v967
    %v1016 = vpack.c.bf16 %v978, %v975
    %v1017 = vpack.c.bf16 %v986, %v983
    %v1018 = vpack.c.bf16 %v994, %v991
    %v1019 = vpack.c.bf16 %v1002, %v999
    %v1020 = vpack.c.bf16 %v1010, %v1007
    %v1029 = vunpack.c.l.b16 %v1013
    %v1030 = vunpack.c.h.b16 %v1013
    %v1031 = vunpack.c.l.b16 %v1014
    %v1032 = vunpack.c.h.b16 %v1014
    %v1033 = vunpack.c.l.b16 %v1015
    %v1034 = vunpack.c.h.b16 %v1015
    %v1035 = vunpack.c.l.b16 %v1016
    %v1036 = vunpack.c.h.b16 %v1016
    %v1037 = vunpack.c.l.b16 %v1017
    %v1038 = vunpack.c.h.b16 %v1017
    %v1039 = vunpack.c.l.b16 %v1018
    %v1040 = vunpack.c.h.b16 %v1018
    %v1041 = vunpack.c.l.b16 %v1019
    %v1042 = vunpack.c.h.b16 %v1019
    %v1043 = vunpack.c.l.b16 %v1020
    %v1044 = vunpack.c.h.b16 %v1020
    %v1045 = vpack.c.b16 %v1029, %v1029
    %v1046 = vpack.c.b16 %v1030, %v1030
    %v1047 = vpack.c.b16 %v1031, %v1031
    %v1048 = vpack.c.b16 %v1032, %v1032
    %v1049 = vpack.c.b16 %v1033, %v1033
    %v1050 = vpack.c.b16 %v1034, %v1034
    %v1051 = vpack.c.b16 %v1035, %v1035
    %v1052 = vpack.c.b16 %v1036, %v1036
    %v1053 = vpack.c.b16 %v1037, %v1037
    %v1054 = vpack.c.b16 %v1038, %v1038
    %v1055 = vpack.c.b16 %v1039, %v1039
    %v1056 = vpack.c.b16 %v1040, %v1040
    %v1057 = vpack.c.b16 %v1041, %v1041
    %v1058 = vpack.c.b16 %v1042, %v1042
    %v1059 = vpack.c.b16 %v1043, %v1043
    %v1060 = vpack.c.b16 %v1044, %v1044
    %1077 = vst [vmem:[#allocation11] sm:$0xf] %v1045
    %1078 = vst [vmem:[#allocation11 + $0x4] sm:$0xf] %v1046
    %1079 = vst [vmem:[#allocation11 + $0x8] sm:$0xf] %v1047
    %1080 = vst [vmem:[#allocation11 + $0xc] sm:$0xf] %v1048
    %1081 = vst [vmem:[#allocation11 + $0x10] sm:$0xf] %v1049
    %1082 = vst [vmem:[#allocation11 + $0x14] sm:$0xf] %v1050
    %1083 = vst [vmem:[#allocation11 + $0x18] sm:$0xf] %v1051
    %1084 = vst [vmem:[#allocation11 + $0x1c] sm:$0xf] %v1052
    %1085 = vst [vmem:[#allocation11 + $0x20] sm:$0xf] %v1053
    %1086 = vst [vmem:[#allocation11 + $0x24] sm:$0xf] %v1054
    %1087 = vst [vmem:[#allocation11 + $0x28] sm:$0xf] %v1055
    %1088 = vst [vmem:[#allocation11 + $0x2c] sm:$0xf] %v1056
    %1089 = vst [vmem:[#allocation11 + $0x30] sm:$0xf] %v1057
    %1090 = vst [vmem:[#allocation11 + $0x34] sm:$0xf] %v1058
    %1091 = vst [vmem:[#allocation11 + $0x38] sm:$0xf] %v1059
    %1092 = vst [vmem:[#allocation11 + $0x3c] sm:$0xf] %v1060
    %v1093 = vlaneseq
    %v1094 = vand.u32 %v1093, 127
    %vm1095 = vcmp.lt.s32.totalorder %v1094, 10
    %v1096 = vsel %vm1095, %v951, -1e+30
    %v1097 = vsel %vm1095, %v954, -1e+30
    %v1098 = vsel %vm1095, %v959, -1e+30
    %v1099 = vsel %vm1095, %v962, -1e+30
    %v1100 = vsel %vm1095, %v967, -1e+30
    %v1101 = vsel %vm1095, %v970, -1e+30
    %v1102 = vsel %vm1095, %v975, -1e+30
    %v1103 = vsel %vm1095, %v978, -1e+30
    %v1104 = vsel %vm1095, %v983, -1e+30
    %v1105 = vsel %vm1095, %v986, -1e+30
    %v1106 = vsel %vm1095, %v991, -1e+30
    %v1107 = vsel %vm1095, %v994, -1e+30
    %v1108 = vsel %vm1095, %v999, -1e+30
    %v1109 = vsel %vm1095, %v1002, -1e+30
    %v1110 = vsel %vm1095, %v1007, -1e+30
    %v1111 = vsel %vm1095, %v1010, -1e+30
    %1112 = vmax.xlane.f32.xlu0 %v1096
    %v1113 = vpop.xlane.xlu0 %1112
    %1114 = vmax.xlane.f32.xlu0 %v1097
    %v1115 = vpop.xlane.xlu0 %1114
    %1116 = vmax.xlane.f32.xlu0 %v1098
    %v1117 = vpop.xlane.xlu0 %1116
    %1118 = vmax.xlane.f32.xlu0 %v1099
    %v1119 = vpop.xlane.xlu0 %1118
    %1120 = vmax.xlane.f32.xlu0 %v1100
    %v1121 = vpop.xlane.xlu0 %1120
    %1122 = vmax.xlane.f32.xlu0 %v1101
    %v1123 = vpop.xlane.xlu0 %1122
    %1124 = vmax.xlane.f32.xlu0 %v1102
    %v1125 = vpop.xlane.xlu0 %1124
    %1126 = vmax.xlane.f32.xlu0 %v1103
    %v1127 = vpop.xlane.xlu0 %1126
    %1128 = vmax.xlane.f32.xlu0 %v1104
    %v1129 = vpop.xlane.xlu0 %1128
    %1130 = vmax.xlane.f32.xlu0 %v1105
    %v1131 = vpop.xlane.xlu0 %1130
    %1132 = vmax.xlane.f32.xlu0 %v1106
    %v1133 = vpop.xlane.xlu0 %1132
    %1134 = vmax.xlane.f32.xlu0 %v1107
    %v1135 = vpop.xlane.xlu0 %1134
    %1136 = vmax.xlane.f32.xlu0 %v1108
    %v1137 = vpop.xlane.xlu0 %1136
    %1138 = vmax.xlane.f32.xlu0 %v1109
    %v1139 = vpop.xlane.xlu0 %1138
    %1140 = vmax.xlane.f32.xlu0 %v1110
    %v1141 = vpop.xlane.xlu0 %1140
    %1142 = vmax.xlane.f32.xlu0 %v1111
    %v1143 = vpop.xlane.xlu0 %1142
    %vm1144 = vcmp.ge.f32.partialorder %v1096, %v1113
    %vm1145 = vcmp.ge.f32.partialorder %v1097, %v1115
    %vm1146 = vcmp.ge.f32.partialorder %v1098, %v1117
    %vm1147 = vcmp.ge.f32.partialorder %v1099, %v1119
    %vm1148 = vcmp.ge.f32.partialorder %v1100, %v1121
    %vm1149 = vcmp.ge.f32.partialorder %v1101, %v1123
    %vm1150 = vcmp.ge.f32.partialorder %v1102, %v1125
    %vm1151 = vcmp.ge.f32.partialorder %v1103, %v1127
    %vm1152 = vcmp.ge.f32.partialorder %v1104, %v1129
    %vm1153 = vcmp.ge.f32.partialorder %v1105, %v1131
    %vm1154 = vcmp.ge.f32.partialorder %v1106, %v1133
    %vm1155 = vcmp.ge.f32.partialorder %v1107, %v1135
    %vm1156 = vcmp.ge.f32.partialorder %v1108, %v1137
    %vm1157 = vcmp.ge.f32.partialorder %v1109, %v1139
    %vm1158 = vcmp.ge.f32.partialorder %v1110, %v1141
    %vm1159 = vcmp.ge.f32.partialorder %v1111, %v1143
    %v1160 = vsel %vm1144, %v1094, 128
    %v1161 = vsel %vm1145, %v1094, 128
    %v1162 = vsel %vm1146, %v1094, 128
    %v1163 = vsel %vm1147, %v1094, 128
    %v1164 = vsel %vm1148, %v1094, 128
    %v1165 = vsel %vm1149, %v1094, 128
    %v1166 = vsel %vm1150, %v1094, 128
    %v1167 = vsel %vm1151, %v1094, 128
    %v1168 = vsel %vm1152, %v1094, 128
    %v1169 = vsel %vm1153, %v1094, 128
    %v1170 = vsel %vm1154, %v1094, 128
    %v1171 = vsel %vm1155, %v1094, 128
    %v1172 = vsel %vm1156, %v1094, 128
    %v1173 = vsel %vm1157, %v1094, 128
    %v1174 = vsel %vm1158, %v1094, 128
    %v1175 = vsel %vm1159, %v1094, 128
    %v1176 = vand.u32 %v1160, 65535
    %v1177 = vshra.s32 %v1160, 16
    %v1178 = vcvt.s32.f32 %v1176
    %v1179 = vcvt.s32.f32 %v1177
    %1180 = vmin.xlane.f32.xlu0 %v1179
    %v1181 = vpop.xlane.xlu0 %1180
    %vm1182 = vcmp.eq.f32.partialorder %v1179, %v1181
    %v1183 = vsel %vm1182, %v1178, inf
    %1184 = vmin.xlane.f32.xlu0 %v1183
    %v1185 = vpop.xlane.xlu0 %1184
    %v1186 = vcvt.f32.s32 %v1185
    %v1187 = vcvt.f32.s32 %v1181
    %v1188 = vshll.u32 %v1187, 16
    %v1189 = vadd.s32 %v1188, %v1186
    %v1190 = vand.u32 %v1161, 65535
    %v1191 = vshra.s32 %v1161, 16
    %v1192 = vcvt.s32.f32 %v1190
    %v1193 = vcvt.s32.f32 %v1191
    %1194 = vmin.xlane.f32.xlu0 %v1193
    %v1195 = vpop.xlane.xlu0 %1194
    %vm1196 = vcmp.eq.f32.partialorder %v1193, %v1195
    %v1197 = vsel %vm1196, %v1192, inf
    %1198 = vmin.xlane.f32.xlu0 %v1197
    %v1199 = vpop.xlane.xlu0 %1198
    %v1200 = vcvt.f32.s32 %v1199
    %v1201 = vcvt.f32.s32 %v1195
    %v1202 = vshll.u32 %v1201, 16
    %v1203 = vadd.s32 %v1202, %v1200
    %v1204 = vand.u32 %v1162, 65535
    %v1205 = vshra.s32 %v1162, 16
    %v1206 = vcvt.s32.f32 %v1204
    %v1207 = vcvt.s32.f32 %v1205
    %1208 = vmin.xlane.f32.xlu0 %v1207
    %v1209 = vpop.xlane.xlu0 %1208
    %vm1210 = vcmp.eq.f32.partialorder %v1207, %v1209
    %v1211 = vsel %vm1210, %v1206, inf
    %1212 = vmin.xlane.f32.xlu0 %v1211
    %v1213 = vpop.xlane.xlu0 %1212
    %v1214 = vcvt.f32.s32 %v1213
    %v1215 = vcvt.f32.s32 %v1209
    %v1216 = vshll.u32 %v1215, 16
    %v1217 = vadd.s32 %v1216, %v1214
    %v1218 = vand.u32 %v1163, 65535
    %v1219 = vshra.s32 %v1163, 16
    %v1220 = vcvt.s32.f32 %v1218
    %v1221 = vcvt.s32.f32 %v1219
    %1222 = vmin.xlane.f32.xlu0 %v1221
    %v1223 = vpop.xlane.xlu0 %1222
    %vm1224 = vcmp.eq.f32.partialorder %v1221, %v1223
    %v1225 = vsel %vm1224, %v1220, inf
    %1226 = vmin.xlane.f32.xlu0 %v1225
    %v1227 = vpop.xlane.xlu0 %1226
    %v1228 = vcvt.f32.s32 %v1227
    %v1229 = vcvt.f32.s32 %v1223
    %v1230 = vshll.u32 %v1229, 16
    %v1231 = vadd.s32 %v1230, %v1228
    %v1232 = vand.u32 %v1164, 65535
    %v1233 = vshra.s32 %v1164, 16
    %v1234 = vcvt.s32.f32 %v1232
    %v1235 = vcvt.s32.f32 %v1233
    %1236 = vmin.xlane.f32.xlu0 %v1235
    %v1237 = vpop.xlane.xlu0 %1236
    %vm1238 = vcmp.eq.f32.partialorder %v1235, %v1237
    %v1239 = vsel %vm1238, %v1234, inf
    %1240 = vmin.xlane.f32.xlu0 %v1239
    %v1241 = vpop.xlane.xlu0 %1240
    %v1242 = vcvt.f32.s32 %v1241
    %v1243 = vcvt.f32.s32 %v1237
    %v1244 = vshll.u32 %v1243, 16
    %v1245 = vadd.s32 %v1244, %v1242
    %v1246 = vand.u32 %v1165, 65535
    %v1247 = vshra.s32 %v1165, 16
    %v1248 = vcvt.s32.f32 %v1246
    %v1249 = vcvt.s32.f32 %v1247
    %1250 = vmin.xlane.f32.xlu0 %v1249
    %v1251 = vpop.xlane.xlu0 %1250
    %vm1252 = vcmp.eq.f32.partialorder %v1249, %v1251
    %v1253 = vsel %vm1252, %v1248, inf
    %1254 = vmin.xlane.f32.xlu0 %v1253
    %v1255 = vpop.xlane.xlu0 %1254
    %v1256 = vcvt.f32.s32 %v1255
    %v1257 = vcvt.f32.s32 %v1251
    %v1258 = vshll.u32 %v1257, 16
    %v1259 = vadd.s32 %v1258, %v1256
    %v1260 = vand.u32 %v1166, 65535
    %v1261 = vshra.s32 %v1166, 16
    %v1262 = vcvt.s32.f32 %v1260
    %v1263 = vcvt.s32.f32 %v1261
    %1264 = vmin.xlane.f32.xlu0 %v1263
    %v1265 = vpop.xlane.xlu0 %1264
    %vm1266 = vcmp.eq.f32.partialorder %v1263, %v1265
    %v1267 = vsel %vm1266, %v1262, inf
    %1268 = vmin.xlane.f32.xlu0 %v1267
    %v1269 = vpop.xlane.xlu0 %1268
    %v1270 = vcvt.f32.s32 %v1269
    %v1271 = vcvt.f32.s32 %v1265
    %v1272 = vshll.u32 %v1271, 16
    %v1273 = vadd.s32 %v1272, %v1270
    %v1274 = vand.u32 %v1167, 65535
    %v1275 = vshra.s32 %v1167, 16
    %v1276 = vcvt.s32.f32 %v1274
    %v1277 = vcvt.s32.f32 %v1275
    %1278 = vmin.xlane.f32.xlu0 %v1277
    %v1279 = vpop.xlane.xlu0 %1278
    %vm1280 = vcmp.eq.f32.partialorder %v1277, %v1279
    %v1281 = vsel %vm1280, %v1276, inf
    %1282 = vmin.xlane.f32.xlu0 %v1281
    %v1283 = vpop.xlane.xlu0 %1282
    %v1284 = vcvt.f32.s32 %v1283
    %v1285 = vcvt.f32.s32 %v1279
    %v1286 = vshll.u32 %v1285, 16
    %v1287 = vadd.s32 %v1286, %v1284
    %v1288 = vand.u32 %v1168, 65535
    %v1289 = vshra.s32 %v1168, 16
    %v1290 = vcvt.s32.f32 %v1288
    %v1291 = vcvt.s32.f32 %v1289
    %1292 = vmin.xlane.f32.xlu0 %v1291
    %v1293 = vpop.xlane.xlu0 %1292
    %vm1294 = vcmp.eq.f32.partialorder %v1291, %v1293
    %v1295 = vsel %vm1294, %v1290, inf
    %1296 = vmin.xlane.f32.xlu0 %v1295
    %v1297 = vpop.xlane.xlu0 %1296
    %v1298 = vcvt.f32.s32 %v1297
    %v1299 = vcvt.f32.s32 %v1293
    %v1300 = vshll.u32 %v1299, 16
    %v1301 = vadd.s32 %v1300, %v1298
    %v1302 = vand.u32 %v1169, 65535
    %v1303 = vshra.s32 %v1169, 16
    %v1304 = vcvt.s32.f32 %v1302
    %v1305 = vcvt.s32.f32 %v1303
    %1306 = vmin.xlane.f32.xlu0 %v1305
    %v1307 = vpop.xlane.xlu0 %1306
    %vm1308 = vcmp.eq.f32.partialorder %v1305, %v1307
    %v1309 = vsel %vm1308, %v1304, inf
    %1310 = vmin.xlane.f32.xlu0 %v1309
    %v1311 = vpop.xlane.xlu0 %1310
    %v1312 = vcvt.f32.s32 %v1311
    %v1313 = vcvt.f32.s32 %v1307
    %v1314 = vshll.u32 %v1313, 16
    %v1315 = vadd.s32 %v1314, %v1312
    %v1316 = vand.u32 %v1170, 65535
    %v1317 = vshra.s32 %v1170, 16
    %v1318 = vcvt.s32.f32 %v1316
    %v1319 = vcvt.s32.f32 %v1317
    %1320 = vmin.xlane.f32.xlu0 %v1319
    %v1321 = vpop.xlane.xlu0 %1320
    %vm1322 = vcmp.eq.f32.partialorder %v1319, %v1321
    %v1323 = vsel %vm1322, %v1318, inf
    %1324 = vmin.xlane.f32.xlu0 %v1323
    %v1325 = vpop.xlane.xlu0 %1324
    %v1326 = vcvt.f32.s32 %v1325
    %v1327 = vcvt.f32.s32 %v1321
    %v1328 = vshll.u32 %v1327, 16
    %v1329 = vadd.s32 %v1328, %v1326
    %v1330 = vand.u32 %v1171, 65535
    %v1331 = vshra.s32 %v1171, 16
    %v1332 = vcvt.s32.f32 %v1330
    %v1333 = vcvt.s32.f32 %v1331
    %1334 = vmin.xlane.f32.xlu0 %v1333
    %v1335 = vpop.xlane.xlu0 %1334
    %vm1336 = vcmp.eq.f32.partialorder %v1333, %v1335
    %v1337 = vsel %vm1336, %v1332, inf
    %1338 = vmin.xlane.f32.xlu0 %v1337
    %v1339 = vpop.xlane.xlu0 %1338
    %v1340 = vcvt.f32.s32 %v1339
    %v1341 = vcvt.f32.s32 %v1335
    %v1342 = vshll.u32 %v1341, 16
    %v1343 = vadd.s32 %v1342, %v1340
    %v1344 = vand.u32 %v1172, 65535
    %v1345 = vshra.s32 %v1172, 16
    %v1346 = vcvt.s32.f32 %v1344
    %v1347 = vcvt.s32.f32 %v1345
    %1348 = vmin.xlane.f32.xlu0 %v1347
    %v1349 = vpop.xlane.xlu0 %1348
    %vm1350 = vcmp.eq.f32.partialorder %v1347, %v1349
    %v1351 = vsel %vm1350, %v1346, inf
    %1352 = vmin.xlane.f32.xlu0 %v1351
    %v1353 = vpop.xlane.xlu0 %1352
    %v1354 = vcvt.f32.s32 %v1353
    %v1355 = vcvt.f32.s32 %v1349
    %v1356 = vshll.u32 %v1355, 16
    %v1357 = vadd.s32 %v1356, %v1354
    %v1358 = vand.u32 %v1173, 65535
    %v1359 = vshra.s32 %v1173, 16
    %v1360 = vcvt.s32.f32 %v1358
    %v1361 = vcvt.s32.f32 %v1359
    %1362 = vmin.xlane.f32.xlu0 %v1361
    %v1363 = vpop.xlane.xlu0 %1362
    %vm1364 = vcmp.eq.f32.partialorder %v1361, %v1363
    %v1365 = vsel %vm1364, %v1360, inf
    %1366 = vmin.xlane.f32.xlu0 %v1365
    %v1367 = vpop.xlane.xlu0 %1366
    %v1368 = vcvt.f32.s32 %v1367
    %v1369 = vcvt.f32.s32 %v1363
    %v1370 = vshll.u32 %v1369, 16
    %v1371 = vadd.s32 %v1370, %v1368
    %v1372 = vand.u32 %v1174, 65535
    %v1373 = vshra.s32 %v1174, 16
    %v1374 = vcvt.s32.f32 %v1372
    %v1375 = vcvt.s32.f32 %v1373
    %1376 = vmin.xlane.f32.xlu0 %v1375
    %v1377 = vpop.xlane.xlu0 %1376
    %vm1378 = vcmp.eq.f32.partialorder %v1375, %v1377
    %v1379 = vsel %vm1378, %v1374, inf
    %1380 = vmin.xlane.f32.xlu0 %v1379
    %v1381 = vpop.xlane.xlu0 %1380
    %v1382 = vcvt.f32.s32 %v1381
    %v1383 = vcvt.f32.s32 %v1377
    %v1384 = vshll.u32 %v1383, 16
    %v1385 = vadd.s32 %v1384, %v1382
    %v1386 = vand.u32 %v1175, 65535
    %v1387 = vshra.s32 %v1175, 16
    %v1388 = vcvt.s32.f32 %v1386
    %v1389 = vcvt.s32.f32 %v1387
    %1390 = vmin.xlane.f32.xlu0 %v1389
    %v1391 = vpop.xlane.xlu0 %1390
    %vm1392 = vcmp.eq.f32.partialorder %v1389, %v1391
    %v1393 = vsel %vm1392, %v1388, inf
    %1394 = vmin.xlane.f32.xlu0 %v1393
    %v1395 = vpop.xlane.xlu0 %1394
    %v1396 = vcvt.f32.s32 %v1395
    %v1397 = vcvt.f32.s32 %v1391
    %v1398 = vshll.u32 %v1397, 16
    %v1399 = vadd.s32 %v1398, %v1396
    %vm1400 = vcmask 7168
    %1401 = vst.msk [vmem:[%s10] sm:$0xff] %vm1400, %v1189
    %1402 = vst.msk [vmem:[%s10 + $0x8] sm:$0xff] %vm1400, %v1203
    %1403 = vst.msk [vmem:[%s10 + $0x10] sm:$0xff] %vm1400, %v1217
    %1404 = vst.msk [vmem:[%s10 + $0x18] sm:$0xff] %vm1400, %v1231
    %1405 = vst.msk [vmem:[%s10 + $0x20] sm:$0xff] %vm1400, %v1245
    %1406 = vst.msk [vmem:[%s10 + $0x28] sm:$0xff] %vm1400, %v1259
    %1407 = vst.msk [vmem:[%s10 + $0x30] sm:$0xff] %vm1400, %v1273
    %1408 = vst.msk [vmem:[%s10 + $0x38] sm:$0xff] %vm1400, %v1287
    %1409 = vst.msk [vmem:[%s10 + $0x40] sm:$0xff] %vm1400, %v1301
    %1410 = vst.msk [vmem:[%s10 + $0x48] sm:$0xff] %vm1400, %v1315
    %1411 = vst.msk [vmem:[%s10 + $0x50] sm:$0xff] %vm1400, %v1329
    %1412 = vst.msk [vmem:[%s10 + $0x58] sm:$0xff] %vm1400, %v1343
    %1413 = vst.msk [vmem:[%s10 + $0x60] sm:$0xff] %vm1400, %v1357
    %1414 = vst.msk [vmem:[%s10 + $0x68] sm:$0xff] %vm1400, %v1371
    %1415 = vst.msk [vmem:[%s10 + $0x70] sm:$0xff] %vm1400, %v1385
    %1416 = vst.msk [vmem:[%s10 + $0x78] sm:$0xff] %vm1400, %v1399
    // Predicated region
    $region58: #{tpu_custom_call.1} parent=1 // pred_check
      _
    $region59: #{tpu_custom_call.1} parent=1 // pred_check_branch
      %1418 = sbr.rel (0) target = $region61
    $region60: #{tpu_custom_call.1} parent=1 // pred_region
      %s1420 = ssub.s32 1024, 1024
      %1421 = vsyncadd [#allocation4], %s1420
      %s1422 = sshll.u32 [#allocation11], 4
      %s1423 = int_to_ptr.vmem [resolvable:$true] %s1422
      %1428 = dma.vmem_to_hbm [thread:$0]  %s1423, 1024, %s9, [#allocation4], 64, 64, 4
    $region61: #{tpu_custom_call.1} parent=1 // pred_fallthru
      _
    // Predicated region
    $region62: #{tpu_custom_call.1} parent=1 // pred_check
      _
    $region63: #{tpu_custom_call.1} parent=1 // pred_check_branch
      %1430 = sbr.rel (0) target = $region65
    $region64: #{tpu_custom_call.1} parent=1 // pred_region
      _
    $region65: #{tpu_custom_call.1} parent=1 // pred_fallthru
      _
    // Predicated region
    $region66: #{tpu_custom_call.1} parent=1 // pred_check
      _
    $region67: #{tpu_custom_call.1} parent=1 // pred_check_branch
      %1432 = sbr.rel (0) target = $region69
    $region68: #{tpu_custom_call.1} parent=1 // pred_region
      %1433 = dma.done [#allocation4], 1024
    $region69: #{tpu_custom_call.1} parent=1 // pred_fallthru
      _
    // Predicated region
    $region70: #{tpu_custom_call.1} parent=1 // pred_check
      _
    $region71: #{tpu_custom_call.1} parent=1 // pred_check_branch
      %1435 = sbr.rel (0) target = $region73
    $region72: #{tpu_custom_call.1} parent=1 // pred_region
      _
    $region73: #{tpu_custom_call.1} parent=1 // pred_fallthru
      _
    %1436 = vsyncpa [#allocation3], 1
    %1437 = vsyncpa [#allocation6], 1
    %1438 = vsyncpa [#allocation9], 1
    %1439 = vsyncpa [#allocation4], 1

</llo_original>
